<compile_context>
chip_gen: v7x
topology: tpu7x:2x2x1
jax: 0.10.0
libtpu: 0.0.40
codegen_flags: <defaults>
</compile_context>

<pallas_src>
import functools

import jax
import jax.numpy as jnp
import numpy as np
from jax import lax
from jax.experimental import pallas as pl
from jax.experimental.pallas import tpu as pltpu


def _encoder_kernel(x_ref, xp_ref, wrow_ref, wih_ref, whh_ref, bias_ref,
                    wout_ref, hout_ref, aout_ref):
    B, N, T = x_ref.shape
    H4 = wih_ref.shape[1]
    H = H4 // 4

    x = x_ref[...]
    xp = xp_ref[...]
    wrow = wrow_ref[...]          # (1, 1, T)  input slice of the attn_linear weight

    # ---- spatial attention -------------------------------------------------
    # hidden/cell init states are zeros, so only the input slice of the attn_linear
    # weight contributes (the 2H zero columns contribute exactly 0).  The scalar
    # attn_linear bias is added uniformly to every score and cancels in the softmax,
    # so it is not passed in.
    # gt[b, n] == torch's attn_linear(...).view(-1, B)[n, b]  (exact f32 VPU reduce).
    gt = jnp.sum(xp * wrow, axis=-1, keepdims=True)              # (B, N, 1)
    m = jnp.max(gt, axis=0, keepdims=True)                       # per-group max
    e = jnp.exp(gt - m)
    # Softmax over the *batch* axis: faithfully replicates torch's .view(-1, batch)
    # + Softmax(dim=1).  Do NOT "fix" this to a per-series softmax.
    wv = e / jnp.sum(e, axis=0, keepdims=True)                   # (B, N, 1)
    # TODO(synk): nn.Dropout(spat_attn_dropout) not modeled (assumed p=0.0 -> identity).
    aout_ref[...] = wv

    weighted = wv * x                                            # (B, N, T)
    wout_ref[...] = weighted

    wih = wih_ref[...]            # (N, 4H)  == W_ih.T
    whh = whh_ref[...]            # (H, 4H)  == W_hh.T
    bias = bias_ref[...]          # (1, 4H)  == b_ih + b_hh

    # ---- input-side gate pre-activations for all time steps -----------------
    # Contract the driving-series axis of `weighted` directly (lhs contracting dim 0,
    # i.e. a transposed-LHS matmul) -- no explicit transpose, no per-batch rescale.
    # B is tiny & static, so these B small matmuls are equivalent to a single
    # (B*T, N) @ (N, 4H) MXU call.  Default precision, f32 accumulation.
    gxs = [
        lax.dot_general(weighted[b], wih, (((0,), (0,)), ((), ())),
                        preferred_element_type=jnp.float32) + bias        # (T, 4H)
        for b in range(B)
    ]

    # ---- batched LSTM recurrence over T steps --------------------------------
    # Python `for` == fully-unrolled straight-line code with static slice indices
    # (the review's unroll request); per-step live state is only a couple of vregs.
    h = jnp.zeros((B, H), jnp.float32)
    c = jnp.zeros((B, H), jnp.float32)
    for t in range(T):
        # (B, 4H) input-side pre-activation for this step (independent of h/c, so the
        # scheduler is free to hoist these packs off the recurrence critical path).
        g_in = jnp.concatenate([gxs[b][t:t + 1, :] for b in range(B)], axis=0)
        g = g_in + jnp.dot(h, whh, preferred_element_type=jnp.float32)     # (B, 4H)
        sg = jax.nn.sigmoid(g)        # one full-vreg EUP push
        tg = jnp.tanh(g)              # one full-vreg EUP push
        i_g = sg[:, 0:H]
        f_g = sg[:, H:2 * H]
        o_g = sg[:, 3 * H:4 * H]
        g_g = tg[:, 2 * H:3 * H]
        c = f_g * c + i_g * g_g
        h = o_g * jnp.tanh(c)
    hout_ref[...] = h


def init_params(key, input_size, time_length, hidden_size):
    ks = jax.random.split(key, 6)
    s = 0.1
    return {
        "attn_w": s * jax.random.normal(ks[0], (1, 2 * hidden_size + time_length), jnp.float32),
        "attn_b": s * jax.random.normal(ks[1], (1,), jnp.float32),
        "w_ih":   s * jax.random.normal(ks[2], (4 * hidden_size, input_size), jnp.float32),
        "w_hh":   s * jax.random.normal(ks[3], (4 * hidden_size, hidden_size), jnp.float32),
        "b_ih":   s * jax.random.normal(ks[4], (4 * hidden_size,), jnp.float32),
        "b_hh":   s * jax.random.normal(ks[5], (4 * hidden_size,), jnp.float32),
    }


@functools.partial(jax.jit, static_argnames=("hidden_size",))
def encoder_forward(x, params, hidden_size):
    B, N, T = x.shape
    H = hidden_size

    # ---- glue: parameter massaging + one layout view of the input (zero compute) ----
    wrow = params["attn_w"][:, 2 * H:].reshape(1, 1, T)      # input slice of attn weight
    xp = jnp.transpose(x.reshape(N, B, T), (1, 0, 2))        # reproduces torch .view(-1, B)
    wih_t = params["w_ih"].T                                 # (N, 4H)
    whh_t = params["w_hh"].T                                 # (H, 4H)
    bias = (params["b_ih"] + params["b_hh"]).reshape(1, 4 * H)

    vmem = pl.BlockSpec(memory_space=pltpu.MemorySpace.VMEM)
    weighted, h_final, attn3 = pl.pallas_call(
        _encoder_kernel,
        out_shape=(
            jax.ShapeDtypeStruct((B, N, T), jnp.float32),    # input_weighted
            jax.ShapeDtypeStruct((B, H), jnp.float32),       # final LSTM hidden state
            jax.ShapeDtypeStruct((B, N, 1), jnp.float32),    # attention weights (transposed view)
        ),
        in_specs=[vmem] * 6,
        out_specs=(vmem, vmem, vmem),
    )(x, xp, wrow, wih_t, whh_t, bias)

    input_weighted = weighted                                # (B, N, T)
    input_encoded = h_final[None]                            # (1, B, H) == h_n
    attn_weights = jnp.transpose(attn3[:, :, 0], (1, 0))     # (N, B), as in torch
    return input_weighted, input_encoded, attn_weights


def encoder_ref_np(x, params, hidden_size):
    """float64 NumPy mirror of the PyTorch forward (exact reference for verification)."""
    x = np.asarray(x, np.float64)
    aw = np.asarray(params["attn_w"], np.float64)
    ab = np.asarray(params["attn_b"], np.float64)
    w_ih = np.asarray(params["w_ih"], np.float64)
    w_hh = np.asarray(params["w_hh"], np.float64)
    b_ih = np.asarray(params["b_ih"], np.float64)
    b_hh = np.asarray(params["b_hh"], np.float64)
    B, N, T = x.shape
    H = hidden_size

    def sigmoid(v):
        return 1.0 / (1.0 + np.exp(-v))

    feat = np.concatenate([np.zeros((B, N, 2 * H)), x], axis=2)
    s = feat.reshape(-1, 2 * H + T) @ aw.T + ab                  # (B*N, 1)
    v = s.reshape(N, B)
    v = v - v.max(axis=1, keepdims=True)
    attn = np.exp(v) / np.exp(v).sum(axis=1, keepdims=True)      # (N, B)
    weighted = attn.T[:, :, None] * x                            # (B, N, T)
    seq = np.transpose(weighted, (2, 0, 1))                      # (T, B, N)

    h = np.zeros((B, H))
    c = np.zeros((B, H))
    for t in range(T):
        g = seq[t] @ w_ih.T + b_ih + h @ w_hh.T + b_hh
        i = sigmoid(g[:, :H])
        f = sigmoid(g[:, H:2 * H])
        gg = np.tanh(g[:, 2 * H:3 * H])
        o = sigmoid(g[:, 3 * H:])
        c = f * c + i * gg
        h = o * np.tanh(c)
    return weighted, h[None], attn


if __name__ == "__main__":
    B, N, T, H = 2, 8, 16, 32   # batch, input_size, time_length, hidden_size
    key = jax.random.PRNGKey(0)
    kx, kp = jax.random.split(key)
    x = jax.random.normal(kx, (B, N, T), jnp.float32)
    params = init_params(kp, N, T, H)

    out = encoder_forward(x, params, H)
    out = jax.block_until_ready(out)
    w_k, h_k, a_k = out

    w_r, h_r, a_r = encoder_ref_np(x, params, H)
    assert w_k.shape == (B, N, T) and h_k.shape == (1, B, H) and a_k.shape == (N, B)
    # Attention weights / weighted input are exact-f32 VPU math in the kernel.
    np.testing.assert_allclose(np.asarray(a_k), a_r, rtol=1e-4, atol=1e-4)
    np.testing.assert_allclose(np.asarray(w_k), w_r, rtol=1e-4, atol=1e-4)
    # Hidden state goes through default-precision (bf16-pass) MXU matmuls per the
    # perf review, so allow bf16-level rounding vs the float64 reference.
    np.testing.assert_allclose(np.asarray(h_k), h_r, rtol=3e-3, atol=3e-3)
    print("KERNEL_OK")
</pallas_src>

<mosaic_0001>
module attributes {stable_mosaic.version = 11 : i64} {
  func.func @_encoder_kernel(%arg0: memref<2x8x16xf32, #tpu.memory_space<vmem>>, %arg1: memref<2x8x16xf32, #tpu.memory_space<vmem>>, %arg2: memref<1x1x16xf32, #tpu.memory_space<vmem>>, %arg3: memref<8x128xf32, #tpu.memory_space<vmem>>, %arg4: memref<32x128xf32, #tpu.memory_space<vmem>>, %arg5: memref<1x128xf32, #tpu.memory_space<vmem>>, %arg6: memref<2x8x16xf32, #tpu.memory_space<vmem>>, %arg7: memref<2x32xf32, #tpu.memory_space<vmem>>, %arg8: memref<2x8x1xf32, #tpu.memory_space<vmem>>) attributes {dimension_semantics = [], scalar_prefetch = 0 : i64, scratch_operands = 0 : i64, tpu.core_type = #tpu.core_type<tc>} {
    %c0 = arith.constant 0 : index
    %c0_0 = arith.constant 0 : index
    %c0_1 = arith.constant 0 : index
    %0 = vector.load %arg0[%c0, %c0_0, %c0_1] : memref<2x8x16xf32, #tpu.memory_space<vmem>>, vector<2x8x16xf32>
    %c0_2 = arith.constant 0 : index
    %c0_3 = arith.constant 0 : index
    %c0_4 = arith.constant 0 : index
    %1 = vector.load %arg1[%c0_2, %c0_3, %c0_4] : memref<2x8x16xf32, #tpu.memory_space<vmem>>, vector<2x8x16xf32>
    %c0_5 = arith.constant 0 : index
    %c0_6 = arith.constant 0 : index
    %c0_7 = arith.constant 0 : index
    %2 = vector.load %arg2[%c0_5, %c0_6, %c0_7] : memref<1x1x16xf32, #tpu.memory_space<vmem>>, vector<1x1x16xf32>
    %3 = vector.broadcast %2 : vector<1x1x16xf32> to vector<2x8x16xf32>
    %4 = arith.mulf %1, %3 : vector<2x8x16xf32>
    %cst = arith.constant dense<0.000000e+00> : vector<2x8xf32>
    %5 = vector.multi_reduction <add>, %4, %cst [2] : vector<2x8x16xf32> to vector<2x8xf32>
    %6 = vector.shape_cast %5 : vector<2x8xf32> to vector<2x8x1xf32>
    %cst_8 = arith.constant dense<0xFF800000> : vector<8x1xf32>
    %7 = vector.multi_reduction <maximumf>, %6, %cst_8 [0] : vector<2x8x1xf32> to vector<8x1xf32>
    %8 = vector.shape_cast %7 : vector<8x1xf32> to vector<1x8x1xf32>
    %9 = vector.broadcast %8 : vector<1x8x1xf32> to vector<2x8x1xf32>
    %10 = arith.subf %6, %9 : vector<2x8x1xf32>
    %11 = math.exp %10 : vector<2x8x1xf32>
    %cst_9 = arith.constant dense<0.000000e+00> : vector<8x1xf32>
    %12 = vector.multi_reduction <add>, %11, %cst_9 [0] : vector<2x8x1xf32> to vector<8x1xf32>
    %13 = vector.shape_cast %12 : vector<8x1xf32> to vector<1x8x1xf32>
    %14 = vector.broadcast %13 : vector<1x8x1xf32> to vector<2x8x1xf32>
    %15 = arith.divf %11, %14 : vector<2x8x1xf32>
    %c0_10 = arith.constant 0 : index
    %c0_11 = arith.constant 0 : index
    %c0_12 = arith.constant 0 : index
    %16 = vector.load %arg8[%c0_10, %c0_11, %c0_12] : memref<2x8x1xf32, #tpu.memory_space<vmem>>, vector<2x8x1xf32>
    tpu.vector_store %arg8[%c0_10, %c0_11, %c0_12], %15 {strides = array<i32>} : memref<2x8x1xf32, #tpu.memory_space<vmem>>, vector<2x8x1xf32>,
    %17 = vector.broadcast %15 : vector<2x8x1xf32> to vector<2x8x16xf32>
    %18 = arith.mulf %17, %0 : vector<2x8x16xf32>
    %c0_13 = arith.constant 0 : index
    %c0_14 = arith.constant 0 : index
    %c0_15 = arith.constant 0 : index
    %19 = vector.load %arg6[%c0_13, %c0_14, %c0_15] : memref<2x8x16xf32, #tpu.memory_space<vmem>>, vector<2x8x16xf32>
    tpu.vector_store %arg6[%c0_13, %c0_14, %c0_15], %18 {strides = array<i32>} : memref<2x8x16xf32, #tpu.memory_space<vmem>>, vector<2x8x16xf32>,
    %c0_16 = arith.constant 0 : index
    %c0_17 = arith.constant 0 : index
    %20 = vector.load %arg3[%c0_16, %c0_17] : memref<8x128xf32, #tpu.memory_space<vmem>>, vector<8x128xf32>
    %c0_18 = arith.constant 0 : index
    %c0_19 = arith.constant 0 : index
    %21 = vector.load %arg4[%c0_18, %c0_19] : memref<32x128xf32, #tpu.memory_space<vmem>>, vector<32x128xf32>
    %c0_20 = arith.constant 0 : index
    %c0_21 = arith.constant 0 : index
    %22 = vector.load %arg5[%c0_20, %c0_21] : memref<1x128xf32, #tpu.memory_space<vmem>>, vector<1x128xf32>
    %23 = vector.extract_strided_slice %18 {offsets = [0, 0, 0], sizes = [1, 8, 16], strides = [1, 1, 1]} : vector<2x8x16xf32> to vector<1x8x16xf32>
    %24 = vector.shape_cast %23 : vector<1x8x16xf32> to vector<8x16xf32>
    %cst_22 = arith.constant dense<0.000000e+00> : vector<16x128xf32>
    %25 = tpu.matmul %24, %20, %cst_22 {dimension_numbers = #tpu.dot_dimension_numbers<[0], [0], [1], [1], [0, 1, 1, 1], [], []>} : vector<8x16xf32>, vector<8x128xf32>, vector<16x128xf32> -> vector<16x128xf32>
    %26 = vector.broadcast %22 : vector<1x128xf32> to vector<16x128xf32>
    %27 = arith.addf %25, %26 : vector<16x128xf32>
    %28 = vector.extract_strided_slice %18 {offsets = [1, 0, 0], sizes = [1, 8, 16], strides = [1, 1, 1]} : vector<2x8x16xf32> to vector<1x8x16xf32>
    %29 = vector.shape_cast %28 : vector<1x8x16xf32> to vector<8x16xf32>
    %cst_23 = arith.constant dense<0.000000e+00> : vector<16x128xf32>
    %30 = tpu.matmul %29, %20, %cst_23 {dimension_numbers = #tpu.dot_dimension_numbers<[0], [0], [1], [1], [0, 1, 1, 1], [], []>} : vector<8x16xf32>, vector<8x128xf32>, vector<16x128xf32> -> vector<16x128xf32>
    %31 = vector.broadcast %22 : vector<1x128xf32> to vector<16x128xf32>
    %32 = arith.addf %30, %31 : vector<16x128xf32>
    %cst_24 = arith.constant 0.000000e+00 : f32
    %33 = vector.broadcast %cst_24 : f32 to vector<2x32xf32>
    %cst_25 = arith.constant 0.000000e+00 : f32
    %34 = vector.broadcast %cst_25 : f32 to vector<2x32xf32>
    %35 = vector.extract_strided_slice %27 {offsets = [0, 0], sizes = [1, 128], strides = [1, 1]} : vector<16x128xf32> to vector<1x128xf32>
    %36 = vector.extract_strided_slice %32 {offsets = [0, 0], sizes = [1, 128], strides = [1, 1]} : vector<16x128xf32> to vector<1x128xf32>
    %37 = tpu.concatenate %35, %36 in 0 : vector<1x128xf32>, vector<1x128xf32> -> vector<2x128xf32>
    %cst_26 = arith.constant dense<0.000000e+00> : vector<2x128xf32>
    %38 = tpu.matmul %33, %21, %cst_26 {dimension_numbers = #tpu.dot_dimension_numbers<[1], [0], [0], [1], [0, 0, 1, 1], [], []>} : vector<2x32xf32>, vector<32x128xf32>, vector<2x128xf32> -> vector<2x128xf32>
    %39 = arith.addf %37, %38 : vector<2x128xf32>
    %40 = arith.negf %39 : vector<2x128xf32>
    %41 = math.exp %40 : vector<2x128xf32>
    %cst_27 = arith.constant 1.000000e+00 : f32
    %42 = vector.broadcast %cst_27 : f32 to vector<2x128xf32>
    %43 = arith.addf %42, %41 : vector<2x128xf32>
    %44 = arith.divf %42, %43 : vector<2x128xf32>
    %45 = math.tanh %39 : vector<2x128xf32>
    %46 = vector.extract_strided_slice %44 {offsets = [0, 0], sizes = [2, 32], strides = [1, 1]} : vector<2x128xf32> to vector<2x32xf32>
    %47 = vector.extract_strided_slice %44 {offsets = [0, 32], sizes = [2, 32], strides = [1, 1]} : vector<2x128xf32> to vector<2x32xf32>
    %48 = vector.extract_strided_slice %44 {offsets = [0, 96], sizes = [2, 32], strides = [1, 1]} : vector<2x128xf32> to vector<2x32xf32>
    %49 = vector.extract_strided_slice %45 {offsets = [0, 64], sizes = [2, 32], strides = [1, 1]} : vector<2x128xf32> to vector<2x32xf32>
    %50 = arith.mulf %47, %34 : vector<2x32xf32>
    %51 = arith.mulf %46, %49 : vector<2x32xf32>
    %52 = arith.addf %50, %51 : vector<2x32xf32>
    %53 = math.tanh %52 : vector<2x32xf32>
    %54 = arith.mulf %48, %53 : vector<2x32xf32>
    %55 = vector.extract_strided_slice %27 {offsets = [1, 0], sizes = [1, 128], strides = [1, 1]} : vector<16x128xf32> to vector<1x128xf32>
    %56 = vector.extract_strided_slice %32 {offsets = [1, 0], sizes = [1, 128], strides = [1, 1]} : vector<16x128xf32> to vector<1x128xf32>
    %57 = tpu.concatenate %55, %56 in 0 : vector<1x128xf32>, vector<1x128xf32> -> vector<2x128xf32>
    %cst_28 = arith.constant dense<0.000000e+00> : vector<2x128xf32>
    %58 = tpu.matmul %54, %21, %cst_28 {dimension_numbers = #tpu.dot_dimension_numbers<[1], [0], [0], [1], [0, 0, 1, 1], [], []>} : vector<2x32xf32>, vector<32x128xf32>, vector<2x128xf32> -> vector<2x128xf32>
    %59 = arith.addf %57, %58 : vector<2x128xf32>
    %60 = arith.negf %59 : vector<2x128xf32>
    %61 = math.exp %60 : vector<2x128xf32>
    %cst_29 = arith.constant 1.000000e+00 : f32
    %62 = vector.broadcast %cst_29 : f32 to vector<2x128xf32>
    %63 = arith.addf %62, %61 : vector<2x128xf32>
    %64 = arith.divf %62, %63 : vector<2x128xf32>
    %65 = math.tanh %59 : vector<2x128xf32>
    %66 = vector.extract_strided_slice %64 {offsets = [0, 0], sizes = [2, 32], strides = [1, 1]} : vector<2x128xf32> to vector<2x32xf32>
    %67 = vector.extract_strided_slice %64 {offsets = [0, 32], sizes = [2, 32], strides = [1, 1]} : vector<2x128xf32> to vector<2x32xf32>
    %68 = vector.extract_strided_slice %64 {offsets = [0, 96], sizes = [2, 32], strides = [1, 1]} : vector<2x128xf32> to vector<2x32xf32>
    %69 = vector.extract_strided_slice %65 {offsets = [0, 64], sizes = [2, 32], strides = [1, 1]} : vector<2x128xf32> to vector<2x32xf32>
    %70 = arith.mulf %67, %52 : vector<2x32xf32>
    %71 = arith.mulf %66, %69 : vector<2x32xf32>
    %72 = arith.addf %70, %71 : vector<2x32xf32>
    %73 = math.tanh %72 : vector<2x32xf32>
    %74 = arith.mulf %68, %73 : vector<2x32xf32>
    %75 = vector.extract_strided_slice %27 {offsets = [2, 0], sizes = [1, 128], strides = [1, 1]} : vector<16x128xf32> to vector<1x128xf32>
    %76 = vector.extract_strided_slice %32 {offsets = [2, 0], sizes = [1, 128], strides = [1, 1]} : vector<16x128xf32> to vector<1x128xf32>
    %77 = tpu.concatenate %75, %76 in 0 : vector<1x128xf32>, vector<1x128xf32> -> vector<2x128xf32>
    %cst_30 = arith.constant dense<0.000000e+00> : vector<2x128xf32>
    %78 = tpu.matmul %74, %21, %cst_30 {dimension_numbers = #tpu.dot_dimension_numbers<[1], [0], [0], [1], [0, 0, 1, 1], [], []>} : vector<2x32xf32>, vector<32x128xf32>, vector<2x128xf32> -> vector<2x128xf32>
    %79 = arith.addf %77, %78 : vector<2x128xf32>
    %80 = arith.negf %79 : vector<2x128xf32>
    %81 = math.exp %80 : vector<2x128xf32>
    %cst_31 = arith.constant 1.000000e+00 : f32
    %82 = vector.broadcast %cst_31 : f32 to vector<2x128xf32>
    %83 = arith.addf %82, %81 : vector<2x128xf32>
    %84 = arith.divf %82, %83 : vector<2x128xf32>
    %85 = math.tanh %79 : vector<2x128xf32>
    %86 = vector.extract_strided_slice %84 {offsets = [0, 0], sizes = [2, 32], strides = [1, 1]} : vector<2x128xf32> to vector<2x32xf32>
    %87 = vector.extract_strided_slice %84 {offsets = [0, 32], sizes = [2, 32], strides = [1, 1]} : vector<2x128xf32> to vector<2x32xf32>
    %88 = vector.extract_strided_slice %84 {offsets = [0, 96], sizes = [2, 32], strides = [1, 1]} : vector<2x128xf32> to vector<2x32xf32>
    %89 = vector.extract_strided_slice %85 {offsets = [0, 64], sizes = [2, 32], strides = [1, 1]} : vector<2x128xf32> to vector<2x32xf32>
    %90 = arith.mulf %87, %72 : vector<2x32xf32>
    %91 = arith.mulf %86, %89 : vector<2x32xf32>
    %92 = arith.addf %90, %91 : vector<2x32xf32>
    %93 = math.tanh %92 : vector<2x32xf32>
    %94 = arith.mulf %88, %93 : vector<2x32xf32>
    %95 = vector.extract_strided_slice %27 {offsets = [3, 0], sizes = [1, 128], strides = [1, 1]} : vector<16x128xf32> to vector<1x128xf32>
    %96 = vector.extract_strided_slice %32 {offsets = [3, 0], sizes = [1, 128], strides = [1, 1]} : vector<16x128xf32> to vector<1x128xf32>
    %97 = tpu.concatenate %95, %96 in 0 : vector<1x128xf32>, vector<1x128xf32> -> vector<2x128xf32>
    %cst_32 = arith.constant dense<0.000000e+00> : vector<2x128xf32>
    %98 = tpu.matmul %94, %21, %cst_32 {dimension_numbers = #tpu.dot_dimension_numbers<[1], [0], [0], [1], [0, 0, 1, 1], [], []>} : vector<2x32xf32>, vector<32x128xf32>, vector<2x128xf32> -> vector<2x128xf32>
    %99 = arith.addf %97, %98 : vector<2x128xf32>
    %100 = arith.negf %99 : vector<2x128xf32>
    %101 = math.exp %100 : vector<2x128xf32>
    %cst_33 = arith.constant 1.000000e+00 : f32
    %102 = vector.broadcast %cst_33 : f32 to vector<2x128xf32>
    %103 = arith.addf %102, %101 : vector<2x128xf32>
    %104 = arith.divf %102, %103 : vector<2x128xf32>
    %105 = math.tanh %99 : vector<2x128xf32>
    %106 = vector.extract_strided_slice %104 {offsets = [0, 0], sizes = [2, 32], strides = [1, 1]} : vector<2x128xf32> to vector<2x32xf32>
    %107 = vector.extract_strided_slice %104 {offsets = [0, 32], sizes = [2, 32], strides = [1, 1]} : vector<2x128xf32> to vector<2x32xf32>
    %108 = vector.extract_strided_slice %104 {offsets = [0, 96], sizes = [2, 32], strides = [1, 1]} : vector<2x128xf32> to vector<2x32xf32>
    %109 = vector.extract_strided_slice %105 {offsets = [0, 64], sizes = [2, 32], strides = [1, 1]} : vector<2x128xf32> to vector<2x32xf32>
    %110 = arith.mulf %107, %92 : vector<2x32xf32>
    %111 = arith.mulf %106, %109 : vector<2x32xf32>
    %112 = arith.addf %110, %111 : vector<2x32xf32>
    %113 = math.tanh %112 : vector<2x32xf32>
    %114 = arith.mulf %108, %113 : vector<2x32xf32>
    %115 = vector.extract_strided_slice %27 {offsets = [4, 0], sizes = [1, 128], strides = [1, 1]} : vector<16x128xf32> to vector<1x128xf32>
    %116 = vector.extract_strided_slice %32 {offsets = [4, 0], sizes = [1, 128], strides = [1, 1]} : vector<16x128xf32> to vector<1x128xf32>
    %117 = tpu.concatenate %115, %116 in 0 : vector<1x128xf32>, vector<1x128xf32> -> vector<2x128xf32>
    %cst_34 = arith.constant dense<0.000000e+00> : vector<2x128xf32>
    %118 = tpu.matmul %114, %21, %cst_34 {dimension_numbers = #tpu.dot_dimension_numbers<[1], [0], [0], [1], [0, 0, 1, 1], [], []>} : vector<2x32xf32>, vector<32x128xf32>, vector<2x128xf32> -> vector<2x128xf32>
    %119 = arith.addf %117, %118 : vector<2x128xf32>
    %120 = arith.negf %119 : vector<2x128xf32>
    %121 = math.exp %120 : vector<2x128xf32>
    %cst_35 = arith.constant 1.000000e+00 : f32
    %122 = vector.broadcast %cst_35 : f32 to vector<2x128xf32>
    %123 = arith.addf %122, %121 : vector<2x128xf32>
    %124 = arith.divf %122, %123 : vector<2x128xf32>
    %125 = math.tanh %119 : vector<2x128xf32>
    %126 = vector.extract_strided_slice %124 {offsets = [0, 0], sizes = [2, 32], strides = [1, 1]} : vector<2x128xf32> to vector<2x32xf32>
    %127 = vector.extract_strided_slice %124 {offsets = [0, 32], sizes = [2, 32], strides = [1, 1]} : vector<2x128xf32> to vector<2x32xf32>
    %128 = vector.extract_strided_slice %124 {offsets = [0, 96], sizes = [2, 32], strides = [1, 1]} : vector<2x128xf32> to vector<2x32xf32>
    %129 = vector.extract_strided_slice %125 {offsets = [0, 64], sizes = [2, 32], strides = [1, 1]} : vector<2x128xf32> to vector<2x32xf32>
    %130 = arith.mulf %127, %112 : vector<2x32xf32>
    %131 = arith.mulf %126, %129 : vector<2x32xf32>
    %132 = arith.addf %130, %131 : vector<2x32xf32>
    %133 = math.tanh %132 : vector<2x32xf32>
    %134 = arith.mulf %128, %133 : vector<2x32xf32>
    %135 = vector.extract_strided_slice %27 {offsets = [5, 0], sizes = [1, 128], strides = [1, 1]} : vector<16x128xf32> to vector<1x128xf32>
    %136 = vector.extract_strided_slice %32 {offsets = [5, 0], sizes = [1, 128], strides = [1, 1]} : vector<16x128xf32> to vector<1x128xf32>
    %137 = tpu.concatenate %135, %136 in 0 : vector<1x128xf32>, vector<1x128xf32> -> vector<2x128xf32>
    %cst_36 = arith.constant dense<0.000000e+00> : vector<2x128xf32>
    %138 = tpu.matmul %134, %21, %cst_36 {dimension_numbers = #tpu.dot_dimension_numbers<[1], [0], [0], [1], [0, 0, 1, 1], [], []>} : vector<2x32xf32>, vector<32x128xf32>, vector<2x128xf32> -> vector<2x128xf32>
    %139 = arith.addf %137, %138 : vector<2x128xf32>
    %140 = arith.negf %139 : vector<2x128xf32>
    %141 = math.exp %140 : vector<2x128xf32>
    %cst_37 = arith.constant 1.000000e+00 : f32
    %142 = vector.broadcast %cst_37 : f32 to vector<2x128xf32>
    %143 = arith.addf %142, %141 : vector<2x128xf32>
    %144 = arith.divf %142, %143 : vector<2x128xf32>
    %145 = math.tanh %139 : vector<2x128xf32>
    %146 = vector.extract_strided_slice %144 {offsets = [0, 0], sizes = [2, 32], strides = [1, 1]} : vector<2x128xf32> to vector<2x32xf32>
    %147 = vector.extract_strided_slice %144 {offsets = [0, 32], sizes = [2, 32], strides = [1, 1]} : vector<2x128xf32> to vector<2x32xf32>
    %148 = vector.extract_strided_slice %144 {offsets = [0, 96], sizes = [2, 32], strides = [1, 1]} : vector<2x128xf32> to vector<2x32xf32>
    %149 = vector.extract_strided_slice %145 {offsets = [0, 64], sizes = [2, 32], strides = [1, 1]} : vector<2x128xf32> to vector<2x32xf32>
    %150 = arith.mulf %147, %132 : vector<2x32xf32>
    %151 = arith.mulf %146, %149 : vector<2x32xf32>
    %152 = arith.addf %150, %151 : vector<2x32xf32>
    %153 = math.tanh %152 : vector<2x32xf32>
    %154 = arith.mulf %148, %153 : vector<2x32xf32>
    %155 = vector.extract_strided_slice %27 {offsets = [6, 0], sizes = [1, 128], strides = [1, 1]} : vector<16x128xf32> to vector<1x128xf32>
    %156 = vector.extract_strided_slice %32 {offsets = [6, 0], sizes = [1, 128], strides = [1, 1]} : vector<16x128xf32> to vector<1x128xf32>
    %157 = tpu.concatenate %155, %156 in 0 : vector<1x128xf32>, vector<1x128xf32> -> vector<2x128xf32>
    %cst_38 = arith.constant dense<0.000000e+00> : vector<2x128xf32>
    %158 = tpu.matmul %154, %21, %cst_38 {dimension_numbers = #tpu.dot_dimension_numbers<[1], [0], [0], [1], [0, 0, 1, 1], [], []>} : vector<2x32xf32>, vector<32x128xf32>, vector<2x128xf32> -> vector<2x128xf32>
    %159 = arith.addf %157, %158 : vector<2x128xf32>
    %160 = arith.negf %159 : vector<2x128xf32>
    %161 = math.exp %160 : vector<2x128xf32>
    %cst_39 = arith.constant 1.000000e+00 : f32
    %162 = vector.broadcast %cst_39 : f32 to vector<2x128xf32>
    %163 = arith.addf %162, %161 : vector<2x128xf32>
    %164 = arith.divf %162, %163 : vector<2x128xf32>
    %165 = math.tanh %159 : vector<2x128xf32>
    %166 = vector.extract_strided_slice %164 {offsets = [0, 0], sizes = [2, 32], strides = [1, 1]} : vector<2x128xf32> to vector<2x32xf32>
    %167 = vector.extract_strided_slice %164 {offsets = [0, 32], sizes = [2, 32], strides = [1, 1]} : vector<2x128xf32> to vector<2x32xf32>
    %168 = vector.extract_strided_slice %164 {offsets = [0, 96], sizes = [2, 32], strides = [1, 1]} : vector<2x128xf32> to vector<2x32xf32>
    %169 = vector.extract_strided_slice %165 {offsets = [0, 64], sizes = [2, 32], strides = [1, 1]} : vector<2x128xf32> to vector<2x32xf32>
    %170 = arith.mulf %167, %152 : vector<2x32xf32>
    %171 = arith.mulf %166, %169 : vector<2x32xf32>
    %172 = arith.addf %170, %171 : vector<2x32xf32>
    %173 = math.tanh %172 : vector<2x32xf32>
    %174 = arith.mulf %168, %173 : vector<2x32xf32>
    %175 = vector.extract_strided_slice %27 {offsets = [7, 0], sizes = [1, 128], strides = [1, 1]} : vector<16x128xf32> to vector<1x128xf32>
    %176 = vector.extract_strided_slice %32 {offsets = [7, 0], sizes = [1, 128], strides = [1, 1]} : vector<16x128xf32> to vector<1x128xf32>
    %177 = tpu.concatenate %175, %176 in 0 : vector<1x128xf32>, vector<1x128xf32> -> vector<2x128xf32>
    %cst_40 = arith.constant dense<0.000000e+00> : vector<2x128xf32>
    %178 = tpu.matmul %174, %21, %cst_40 {dimension_numbers = #tpu.dot_dimension_numbers<[1], [0], [0], [1], [0, 0, 1, 1], [], []>} : vector<2x32xf32>, vector<32x128xf32>, vector<2x128xf32> -> vector<2x128xf32>
    %179 = arith.addf %177, %178 : vector<2x128xf32>
    %180 = arith.negf %179 : vector<2x128xf32>
    %181 = math.exp %180 : vector<2x128xf32>
    %cst_41 = arith.constant 1.000000e+00 : f32
    %182 = vector.broadcast %cst_41 : f32 to vector<2x128xf32>
    %183 = arith.addf %182, %181 : vector<2x128xf32>
    %184 = arith.divf %182, %183 : vector<2x128xf32>
    %185 = math.tanh %179 : vector<2x128xf32>
    %186 = vector.extract_strided_slice %184 {offsets = [0, 0], sizes = [2, 32], strides = [1, 1]} : vector<2x128xf32> to vector<2x32xf32>
    %187 = vector.extract_strided_slice %184 {offsets = [0, 32], sizes = [2, 32], strides = [1, 1]} : vector<2x128xf32> to vector<2x32xf32>
    %188 = vector.extract_strided_slice %184 {offsets = [0, 96], sizes = [2, 32], strides = [1, 1]} : vector<2x128xf32> to vector<2x32xf32>
    %189 = vector.extract_strided_slice %185 {offsets = [0, 64], sizes = [2, 32], strides = [1, 1]} : vector<2x128xf32> to vector<2x32xf32>
    %190 = arith.mulf %187, %172 : vector<2x32xf32>
    %191 = arith.mulf %186, %189 : vector<2x32xf32>
    %192 = arith.addf %190, %191 : vector<2x32xf32>
    %193 = math.tanh %192 : vector<2x32xf32>
    %194 = arith.mulf %188, %193 : vector<2x32xf32>
    %195 = vector.extract_strided_slice %27 {offsets = [8, 0], sizes = [1, 128], strides = [1, 1]} : vector<16x128xf32> to vector<1x128xf32>
    %196 = vector.extract_strided_slice %32 {offsets = [8, 0], sizes = [1, 128], strides = [1, 1]} : vector<16x128xf32> to vector<1x128xf32>
    %197 = tpu.concatenate %195, %196 in 0 : vector<1x128xf32>, vector<1x128xf32> -> vector<2x128xf32>
    %cst_42 = arith.constant dense<0.000000e+00> : vector<2x128xf32>
    %198 = tpu.matmul %194, %21, %cst_42 {dimension_numbers = #tpu.dot_dimension_numbers<[1], [0], [0], [1], [0, 0, 1, 1], [], []>} : vector<2x32xf32>, vector<32x128xf32>, vector<2x128xf32> -> vector<2x128xf32>
    %199 = arith.addf %197, %198 : vector<2x128xf32>
    %200 = arith.negf %199 : vector<2x128xf32>
    %201 = math.exp %200 : vector<2x128xf32>
    %cst_43 = arith.constant 1.000000e+00 : f32
    %202 = vector.broadcast %cst_43 : f32 to vector<2x128xf32>
    %203 = arith.addf %202, %201 : vector<2x128xf32>
    %204 = arith.divf %202, %203 : vector<2x128xf32>
    %205 = math.tanh %199 : vector<2x128xf32>
    %206 = vector.extract_strided_slice %204 {offsets = [0, 0], sizes = [2, 32], strides = [1, 1]} : vector<2x128xf32> to vector<2x32xf32>
    %207 = vector.extract_strided_slice %204 {offsets = [0, 32], sizes = [2, 32], strides = [1, 1]} : vector<2x128xf32> to vector<2x32xf32>
    %208 = vector.extract_strided_slice %204 {offsets = [0, 96], sizes = [2, 32], strides = [1, 1]} : vector<2x128xf32> to vector<2x32xf32>
    %209 = vector.extract_strided_slice %205 {offsets = [0, 64], sizes = [2, 32], strides = [1, 1]} : vector<2x128xf32> to vector<2x32xf32>
    %210 = arith.mulf %207, %192 : vector<2x32xf32>
    %211 = arith.mulf %206, %209 : vector<2x32xf32>
    %212 = arith.addf %210, %211 : vector<2x32xf32>
    %213 = math.tanh %212 : vector<2x32xf32>
    %214 = arith.mulf %208, %213 : vector<2x32xf32>
    %215 = vector.extract_strided_slice %27 {offsets = [9, 0], sizes = [1, 128], strides = [1, 1]} : vector<16x128xf32> to vector<1x128xf32>
    %216 = vector.extract_strided_slice %32 {offsets = [9, 0], sizes = [1, 128], strides = [1, 1]} : vector<16x128xf32> to vector<1x128xf32>
    %217 = tpu.concatenate %215, %216 in 0 : vector<1x128xf32>, vector<1x128xf32> -> vector<2x128xf32>
    %cst_44 = arith.constant dense<0.000000e+00> : vector<2x128xf32>
    %218 = tpu.matmul %214, %21, %cst_44 {dimension_numbers = #tpu.dot_dimension_numbers<[1], [0], [0], [1], [0, 0, 1, 1], [], []>} : vector<2x32xf32>, vector<32x128xf32>, vector<2x128xf32> -> vector<2x128xf32>
    %219 = arith.addf %217, %218 : vector<2x128xf32>
    %220 = arith.negf %219 : vector<2x128xf32>
    %221 = math.exp %220 : vector<2x128xf32>
    %cst_45 = arith.constant 1.000000e+00 : f32
    %222 = vector.broadcast %cst_45 : f32 to vector<2x128xf32>
    %223 = arith.addf %222, %221 : vector<2x128xf32>
    %224 = arith.divf %222, %223 : vector<2x128xf32>
    %225 = math.tanh %219 : vector<2x128xf32>
    %226 = vector.extract_strided_slice %224 {offsets = [0, 0], sizes = [2, 32], strides = [1, 1]} : vector<2x128xf32> to vector<2x32xf32>
    %227 = vector.extract_strided_slice %224 {offsets = [0, 32], sizes = [2, 32], strides = [1, 1]} : vector<2x128xf32> to vector<2x32xf32>
    %228 = vector.extract_strided_slice %224 {offsets = [0, 96], sizes = [2, 32], strides = [1, 1]} : vector<2x128xf32> to vector<2x32xf32>
    %229 = vector.extract_strided_slice %225 {offsets = [0, 64], sizes = [2, 32], strides = [1, 1]} : vector<2x128xf32> to vector<2x32xf32>
    %230 = arith.mulf %227, %212 : vector<2x32xf32>
    %231 = arith.mulf %226, %229 : vector<2x32xf32>
    %232 = arith.addf %230, %231 : vector<2x32xf32>
    %233 = math.tanh %232 : vector<2x32xf32>
    %234 = arith.mulf %228, %233 : vector<2x32xf32>
    %235 = vector.extract_strided_slice %27 {offsets = [10, 0], sizes = [1, 128], strides = [1, 1]} : vector<16x128xf32> to vector<1x128xf32>
    %236 = vector.extract_strided_slice %32 {offsets = [10, 0], sizes = [1, 128], strides = [1, 1]} : vector<16x128xf32> to vector<1x128xf32>
    %237 = tpu.concatenate %235, %236 in 0 : vector<1x128xf32>, vector<1x128xf32> -> vector<2x128xf32>
    %cst_46 = arith.constant dense<0.000000e+00> : vector<2x128xf32>
    %238 = tpu.matmul %234, %21, %cst_46 {dimension_numbers = #tpu.dot_dimension_numbers<[1], [0], [0], [1], [0, 0, 1, 1], [], []>} : vector<2x32xf32>, vector<32x128xf32>, vector<2x128xf32> -> vector<2x128xf32>
    %239 = arith.addf %237, %238 : vector<2x128xf32>
    %240 = arith.negf %239 : vector<2x128xf32>
    %241 = math.exp %240 : vector<2x128xf32>
    %cst_47 = arith.constant 1.000000e+00 : f32
    %242 = vector.broadcast %cst_47 : f32 to vector<2x128xf32>
    %243 = arith.addf %242, %241 : vector<2x128xf32>
    %244 = arith.divf %242, %243 : vector<2x128xf32>
    %245 = math.tanh %239 : vector<2x128xf32>
    %246 = vector.extract_strided_slice %244 {offsets = [0, 0], sizes = [2, 32], strides = [1, 1]} : vector<2x128xf32> to vector<2x32xf32>
    %247 = vector.extract_strided_slice %244 {offsets = [0, 32], sizes = [2, 32], strides = [1, 1]} : vector<2x128xf32> to vector<2x32xf32>
    %248 = vector.extract_strided_slice %244 {offsets = [0, 96], sizes = [2, 32], strides = [1, 1]} : vector<2x128xf32> to vector<2x32xf32>
    %249 = vector.extract_strided_slice %245 {offsets = [0, 64], sizes = [2, 32], strides = [1, 1]} : vector<2x128xf32> to vector<2x32xf32>
    %250 = arith.mulf %247, %232 : vector<2x32xf32>
    %251 = arith.mulf %246, %249 : vector<2x32xf32>
    %252 = arith.addf %250, %251 : vector<2x32xf32>
    %253 = math.tanh %252 : vector<2x32xf32>
    %254 = arith.mulf %248, %253 : vector<2x32xf32>
    %255 = vector.extract_strided_slice %27 {offsets = [11, 0], sizes = [1, 128], strides = [1, 1]} : vector<16x128xf32> to vector<1x128xf32>
    %256 = vector.extract_strided_slice %32 {offsets = [11, 0], sizes = [1, 128], strides = [1, 1]} : vector<16x128xf32> to vector<1x128xf32>
    %257 = tpu.concatenate %255, %256 in 0 : vector<1x128xf32>, vector<1x128xf32> -> vector<2x128xf32>
    %cst_48 = arith.constant dense<0.000000e+00> : vector<2x128xf32>
    %258 = tpu.matmul %254, %21, %cst_48 {dimension_numbers = #tpu.dot_dimension_numbers<[1], [0], [0], [1], [0, 0, 1, 1], [], []>} : vector<2x32xf32>, vector<32x128xf32>, vector<2x128xf32> -> vector<2x128xf32>
    %259 = arith.addf %257, %258 : vector<2x128xf32>
    %260 = arith.negf %259 : vector<2x128xf32>
    %261 = math.exp %260 : vector<2x128xf32>
    %cst_49 = arith.constant 1.000000e+00 : f32
    %262 = vector.broadcast %cst_49 : f32 to vector<2x128xf32>
    %263 = arith.addf %262, %261 : vector<2x128xf32>
    %264 = arith.divf %262, %263 : vector<2x128xf32>
    %265 = math.tanh %259 : vector<2x128xf32>
    %266 = vector.extract_strided_slice %264 {offsets = [0, 0], sizes = [2, 32], strides = [1, 1]} : vector<2x128xf32> to vector<2x32xf32>
    %267 = vector.extract_strided_slice %264 {offsets = [0, 32], sizes = [2, 32], strides = [1, 1]} : vector<2x128xf32> to vector<2x32xf32>
    %268 = vector.extract_strided_slice %264 {offsets = [0, 96], sizes = [2, 32], strides = [1, 1]} : vector<2x128xf32> to vector<2x32xf32>
    %269 = vector.extract_strided_slice %265 {offsets = [0, 64], sizes = [2, 32], strides = [1, 1]} : vector<2x128xf32> to vector<2x32xf32>
    %270 = arith.mulf %267, %252 : vector<2x32xf32>
    %271 = arith.mulf %266, %269 : vector<2x32xf32>
    %272 = arith.addf %270, %271 : vector<2x32xf32>
    %273 = math.tanh %272 : vector<2x32xf32>
    %274 = arith.mulf %268, %273 : vector<2x32xf32>
    %275 = vector.extract_strided_slice %27 {offsets = [12, 0], sizes = [1, 128], strides = [1, 1]} : vector<16x128xf32> to vector<1x128xf32>
    %276 = vector.extract_strided_slice %32 {offsets = [12, 0], sizes = [1, 128], strides = [1, 1]} : vector<16x128xf32> to vector<1x128xf32>
    %277 = tpu.concatenate %275, %276 in 0 : vector<1x128xf32>, vector<1x128xf32> -> vector<2x128xf32>
    %cst_50 = arith.constant dense<0.000000e+00> : vector<2x128xf32>
    %278 = tpu.matmul %274, %21, %cst_50 {dimension_numbers = #tpu.dot_dimension_numbers<[1], [0], [0], [1], [0, 0, 1, 1], [], []>} : vector<2x32xf32>, vector<32x128xf32>, vector<2x128xf32> -> vector<2x128xf32>
    %279 = arith.addf %277, %278 : vector<2x128xf32>
    %280 = arith.negf %279 : vector<2x128xf32>
    %281 = math.exp %280 : vector<2x128xf32>
    %cst_51 = arith.constant 1.000000e+00 : f32
    %282 = vector.broadcast %cst_51 : f32 to vector<2x128xf32>
    %283 = arith.addf %282, %281 : vector<2x128xf32>
    %284 = arith.divf %282, %283 : vector<2x128xf32>
    %285 = math.tanh %279 : vector<2x128xf32>
    %286 = vector.extract_strided_slice %284 {offsets = [0, 0], sizes = [2, 32], strides = [1, 1]} : vector<2x128xf32> to vector<2x32xf32>
    %287 = vector.extract_strided_slice %284 {offsets = [0, 32], sizes = [2, 32], strides = [1, 1]} : vector<2x128xf32> to vector<2x32xf32>
    %288 = vector.extract_strided_slice %284 {offsets = [0, 96], sizes = [2, 32], strides = [1, 1]} : vector<2x128xf32> to vector<2x32xf32>
    %289 = vector.extract_strided_slice %285 {offsets = [0, 64], sizes = [2, 32], strides = [1, 1]} : vector<2x128xf32> to vector<2x32xf32>
    %290 = arith.mulf %287, %272 : vector<2x32xf32>
    %291 = arith.mulf %286, %289 : vector<2x32xf32>
    %292 = arith.addf %290, %291 : vector<2x32xf32>
    %293 = math.tanh %292 : vector<2x32xf32>
    %294 = arith.mulf %288, %293 : vector<2x32xf32>
    %295 = vector.extract_strided_slice %27 {offsets = [13, 0], sizes = [1, 128], strides = [1, 1]} : vector<16x128xf32> to vector<1x128xf32>
    %296 = vector.extract_strided_slice %32 {offsets = [13, 0], sizes = [1, 128], strides = [1, 1]} : vector<16x128xf32> to vector<1x128xf32>
    %297 = tpu.concatenate %295, %296 in 0 : vector<1x128xf32>, vector<1x128xf32> -> vector<2x128xf32>
    %cst_52 = arith.constant dense<0.000000e+00> : vector<2x128xf32>
    %298 = tpu.matmul %294, %21, %cst_52 {dimension_numbers = #tpu.dot_dimension_numbers<[1], [0], [0], [1], [0, 0, 1, 1], [], []>} : vector<2x32xf32>, vector<32x128xf32>, vector<2x128xf32> -> vector<2x128xf32>
    %299 = arith.addf %297, %298 : vector<2x128xf32>
    %300 = arith.negf %299 : vector<2x128xf32>
    %301 = math.exp %300 : vector<2x128xf32>
    %cst_53 = arith.constant 1.000000e+00 : f32
    %302 = vector.broadcast %cst_53 : f32 to vector<2x128xf32>
    %303 = arith.addf %302, %301 : vector<2x128xf32>
    %304 = arith.divf %302, %303 : vector<2x128xf32>
    %305 = math.tanh %299 : vector<2x128xf32>
    %306 = vector.extract_strided_slice %304 {offsets = [0, 0], sizes = [2, 32], strides = [1, 1]} : vector<2x128xf32> to vector<2x32xf32>
    %307 = vector.extract_strided_slice %304 {offsets = [0, 32], sizes = [2, 32], strides = [1, 1]} : vector<2x128xf32> to vector<2x32xf32>
    %308 = vector.extract_strided_slice %304 {offsets = [0, 96], sizes = [2, 32], strides = [1, 1]} : vector<2x128xf32> to vector<2x32xf32>
    %309 = vector.extract_strided_slice %305 {offsets = [0, 64], sizes = [2, 32], strides = [1, 1]} : vector<2x128xf32> to vector<2x32xf32>
    %310 = arith.mulf %307, %292 : vector<2x32xf32>
    %311 = arith.mulf %306, %309 : vector<2x32xf32>
    %312 = arith.addf %310, %311 : vector<2x32xf32>
    %313 = math.tanh %312 : vector<2x32xf32>
    %314 = arith.mulf %308, %313 : vector<2x32xf32>
    %315 = vector.extract_strided_slice %27 {offsets = [14, 0], sizes = [1, 128], strides = [1, 1]} : vector<16x128xf32> to vector<1x128xf32>
    %316 = vector.extract_strided_slice %32 {offsets = [14, 0], sizes = [1, 128], strides = [1, 1]} : vector<16x128xf32> to vector<1x128xf32>
    %317 = tpu.concatenate %315, %316 in 0 : vector<1x128xf32>, vector<1x128xf32> -> vector<2x128xf32>
    %cst_54 = arith.constant dense<0.000000e+00> : vector<2x128xf32>
    %318 = tpu.matmul %314, %21, %cst_54 {dimension_numbers = #tpu.dot_dimension_numbers<[1], [0], [0], [1], [0, 0, 1, 1], [], []>} : vector<2x32xf32>, vector<32x128xf32>, vector<2x128xf32> -> vector<2x128xf32>
    %319 = arith.addf %317, %318 : vector<2x128xf32>
    %320 = arith.negf %319 : vector<2x128xf32>
    %321 = math.exp %320 : vector<2x128xf32>
    %cst_55 = arith.constant 1.000000e+00 : f32
    %322 = vector.broadcast %cst_55 : f32 to vector<2x128xf32>
    %323 = arith.addf %322, %321 : vector<2x128xf32>
    %324 = arith.divf %322, %323 : vector<2x128xf32>
    %325 = math.tanh %319 : vector<2x128xf32>
    %326 = vector.extract_strided_slice %324 {offsets = [0, 0], sizes = [2, 32], strides = [1, 1]} : vector<2x128xf32> to vector<2x32xf32>
    %327 = vector.extract_strided_slice %324 {offsets = [0, 32], sizes = [2, 32], strides = [1, 1]} : vector<2x128xf32> to vector<2x32xf32>
    %328 = vector.extract_strided_slice %324 {offsets = [0, 96], sizes = [2, 32], strides = [1, 1]} : vector<2x128xf32> to vector<2x32xf32>
    %329 = vector.extract_strided_slice %325 {offsets = [0, 64], sizes = [2, 32], strides = [1, 1]} : vector<2x128xf32> to vector<2x32xf32>
    %330 = arith.mulf %327, %312 : vector<2x32xf32>
    %331 = arith.mulf %326, %329 : vector<2x32xf32>
    %332 = arith.addf %330, %331 : vector<2x32xf32>
    %333 = math.tanh %332 : vector<2x32xf32>
    %334 = arith.mulf %328, %333 : vector<2x32xf32>
    %335 = vector.extract_strided_slice %27 {offsets = [15, 0], sizes = [1, 128], strides = [1, 1]} : vector<16x128xf32> to vector<1x128xf32>
    %336 = vector.extract_strided_slice %32 {offsets = [15, 0], sizes = [1, 128], strides = [1, 1]} : vector<16x128xf32> to vector<1x128xf32>
    %337 = tpu.concatenate %335, %336 in 0 : vector<1x128xf32>, vector<1x128xf32> -> vector<2x128xf32>
    %cst_56 = arith.constant dense<0.000000e+00> : vector<2x128xf32>
    %338 = tpu.matmul %334, %21, %cst_56 {dimension_numbers = #tpu.dot_dimension_numbers<[1], [0], [0], [1], [0, 0, 1, 1], [], []>} : vector<2x32xf32>, vector<32x128xf32>, vector<2x128xf32> -> vector<2x128xf32>
    %339 = arith.addf %337, %338 : vector<2x128xf32>
    %340 = arith.negf %339 : vector<2x128xf32>
    %341 = math.exp %340 : vector<2x128xf32>
    %cst_57 = arith.constant 1.000000e+00 : f32
    %342 = vector.broadcast %cst_57 : f32 to vector<2x128xf32>
    %343 = arith.addf %342, %341 : vector<2x128xf32>
    %344 = arith.divf %342, %343 : vector<2x128xf32>
    %345 = math.tanh %339 : vector<2x128xf32>
    %346 = vector.extract_strided_slice %344 {offsets = [0, 0], sizes = [2, 32], strides = [1, 1]} : vector<2x128xf32> to vector<2x32xf32>
    %347 = vector.extract_strided_slice %344 {offsets = [0, 32], sizes = [2, 32], strides = [1, 1]} : vector<2x128xf32> to vector<2x32xf32>
    %348 = vector.extract_strided_slice %344 {offsets = [0, 96], sizes = [2, 32], strides = [1, 1]} : vector<2x128xf32> to vector<2x32xf32>
    %349 = vector.extract_strided_slice %345 {offsets = [0, 64], sizes = [2, 32], strides = [1, 1]} : vector<2x128xf32> to vector<2x32xf32>
    %350 = arith.mulf %347, %332 : vector<2x32xf32>
    %351 = arith.mulf %346, %349 : vector<2x32xf32>
    %352 = arith.addf %350, %351 : vector<2x32xf32>
    %353 = math.tanh %352 : vector<2x32xf32>
    %354 = arith.mulf %348, %353 : vector<2x32xf32>
    %c0_58 = arith.constant 0 : index
    %c0_59 = arith.constant 0 : index
    %355 = vector.load %arg7[%c0_58, %c0_59] : memref<2x32xf32, #tpu.memory_space<vmem>>, vector<2x32xf32>
    tpu.vector_store %arg7[%c0_58, %c0_59], %354 {strides = array<i32>} : memref<2x32xf32, #tpu.memory_space<vmem>>, vector<2x32xf32>,
    return
  }
}

</mosaic_0001>

<llo_original>
// kernel: encoder_forward.1
$region0: #{encoder_forward.1}
  #allocation0 [shape = 'u32[]', space=smem, size = 0x4, offset = 0x4, fixed_abs, tag = 'smem constant byte address 0x4 - core index']
  #allocation1 [shape = 'u32[144,128]{1,0:T(1,128)}', space=vmem, size = 0x12000, scoped, tag = 'internal scratch']
  %s0 = inlined_call_operand.vmem [shape: f32[2,8,16], index: 0, kind: input, shape index: {}]
  %s1 = inlined_call_operand.vmem [shape: f32[2,8,16], index: 1, kind: input, shape index: {}]
  %s2 = inlined_call_operand.vmem [shape: f32[1,1,16], index: 2, kind: input, shape index: {}]
  %s3 = inlined_call_operand.vmem [shape: f32[8,128], index: 3, kind: input, shape index: {}]
  %s4 = inlined_call_operand.vmem [shape: f32[32,128], index: 4, kind: input, shape index: {}]
  %s5 = inlined_call_operand.vmem [shape: f32[1,128], index: 5, kind: input, shape index: {}]
  %s6 = inlined_call_operand.hbm [shape: f32[2,8,16], index: 6, kind: output, shape index: {0}]
  %s7 = inlined_call_operand.hbm [shape: f32[2,32], index: 7, kind: output, shape index: {1}]
  %s8 = inlined_call_operand.vmem [shape: f32[2,8,1], index: 8, kind: output, shape index: {2}]
  %9 = xla_tuple %s6, %s7, %s8
  %s10 = sld [smem:[#allocation0]]
  $region50: #{encoder_forward.1} parent=0
    _
  %s12 = ssub.s32 1, %s10
  %s13 = scalar_select 0, %s12, %s10
  $region1: #{encoder_forward.1} parent=0
    #allocation2 [shape = 'u8[8192]{0}', space=vmem, size = 0x2000, scoped, tag = 'output window, operand 0, single buffered']
    #allocation3 [shape = 's32[1]{0}', space=sflag, size = 0x4, scoped, tag = 'scoped memory for encoder_forward.1']
    #allocation4 [shape = 'u8[1024]{0}', space=vmem, size = 0x400, scoped, tag = 'output window, operand 1, single buffered']
    #allocation5 [shape = 's32[1]{0}', space=sflag, size = 0x4, scoped, tag = 'scoped memory for encoder_forward.1']
    %14 = vsyncpa [#allocation3], 0
    %15 = vsyncpa [#allocation5], 0
    // Predicated region
    $region2: #{encoder_forward.1} parent=1 // pred_check
      _
    $region3: #{encoder_forward.1} parent=1 // pred_check_branch
      %17 = sbr.rel (0) target = $region5
    $region4: #{encoder_forward.1} parent=1 // pred_region
      _
    $region5: #{encoder_forward.1} parent=1 // pred_fallthru
      _
    // Predicated region
    $region6: #{encoder_forward.1} parent=1 // pred_check
      _
    $region7: #{encoder_forward.1} parent=1 // pred_check_branch
      %19 = sbr.rel (0) target = $region9
    $region8: #{encoder_forward.1} parent=1 // pred_region
      _
    $region9: #{encoder_forward.1} parent=1 // pred_fallthru
      _
    // Predicated region
    $region10: #{encoder_forward.1} parent=1 // pred_check
      _
    $region11: #{encoder_forward.1} parent=1 // pred_check_branch
      %21 = sbr.rel (0) target = $region13
    $region12: #{encoder_forward.1} parent=1 // pred_region
      _
    $region13: #{encoder_forward.1} parent=1 // pred_fallthru
      _
    // Predicated region
    $region14: #{encoder_forward.1} parent=1 // pred_check
      _
    $region15: #{encoder_forward.1} parent=1 // pred_check_branch
      %23 = sbr.rel (0) target = $region17
    $region16: #{encoder_forward.1} parent=1 // pred_region
      _
    $region17: #{encoder_forward.1} parent=1 // pred_fallthru
      _
    // Predicated region
    $region18: #{encoder_forward.1} parent=1 // pred_check
      _
    $region19: #{encoder_forward.1} parent=1 // pred_check_branch
      %25 = sbr.rel (0) target = $region21
    $region20: #{encoder_forward.1} parent=1 // pred_region
      _
    $region21: #{encoder_forward.1} parent=1 // pred_fallthru
      _
    // Predicated region
    $region22: #{encoder_forward.1} parent=1 // pred_check
      _
    $region23: #{encoder_forward.1} parent=1 // pred_check_branch
      %27 = sbr.rel (0) target = $region25
    $region24: #{encoder_forward.1} parent=1 // pred_region
      _
    $region25: #{encoder_forward.1} parent=1 // pred_fallthru
      _
    %v28 = vld [vmem:[%s0] sm:$0xff]
    %v29 = vld [vmem:[%s0 + $0x8] sm:$0xff]
    %v30 = vld [vmem:[%s1] sm:$0xff]
    %v31 = vld [vmem:[%s1 + $0x8] sm:$0xff]
    %v32 = vld [vmem:[%s2] sm:$0x1]
    %v34 = vlaneseq
    %v35 = vshrl.u32 %v34, 7
    %v36 = vsub.s32 0, %v35
    %v37 = vrot.slane %v32, %v36
    %v39 = vmul.f32 %v30, %v37
    %v40 = vmul.f32 %v31, %v37
    %vm41 = vcmask 130048
    %v42 = vsel %vm41, %v39, 0.0
    %43 = vadd.xlane.f32.xlu0 %v42
    %v44 = vpop.xlane.xlu0 %43
    %v45 = vsel %vm41, %v40, 0.0
    %46 = vadd.xlane.f32.xlu0 %v45
    %v47 = vpop.xlane.xlu0 %46
    %v48 = vmax.f32 %v44, %v47
    %v49 = vsub.f32 %v44, %v48
    %v50 = vsub.f32 %v47, %v48
    %v51 = vmul.f32 %v49, 1.442695
    %v52 = vpow.pop %v51
    %v53 = vmul.f32 %v50, 1.442695
    %v54 = vpow.pop %v53
    %v55 = vadd.f32 %v52, %v54
    %v56 = vrcp.pop %v55
    %v57 = vmul.f32 %v52, %v56
    %v58 = vmul.f32 %v54, %v56
    %vm59 = vcmask 7168
    %60 = vst.msk [vmem:[%s8] sm:$0xff] %vm59, %v57
    %61 = vst.msk [vmem:[%s8 + $0x8] sm:$0xff] %vm59, %v58
    %v62 = vmul.f32 %v57, %v28
    %v63 = vmul.f32 %v58, %v29
    %64 = vst.msk [vmem:[#allocation2] sm:$0xff] %vm41, %v62
    %65 = vst.msk [vmem:[#allocation2 + $0x8] sm:$0xff] %vm41, %v63
    %v66 = vld [vmem:[%s3] sm:$0xff]
    %v67 = vld [vmem:[%s4] sm:$0xff]
    %v68 = vld [vmem:[%s4 + $0x8] sm:$0xff]
    %v69 = vld [vmem:[%s4 + $0x10] sm:$0xff]
    %v70 = vld [vmem:[%s4 + $0x18] sm:$0xff]
    %v71 = vld [vmem:[%s5] sm:$0x1]
    %v73 = vlaneseq
    %v74 = vshrl.u32 %v73, 7
    %v75 = vsub.s32 0, %v74
    %v76 = vrot.slane %v71, %v75
    %78 = vxpose.xlu0.b32.start [1/16] %v62, 128
    %79 = vxpose.xlu0.b32.cont [2/16] 0.0, 128
    %80 = vxpose.xlu0.b32.cont [3/16] 0.0, 128
    %81 = vxpose.xlu0.b32.cont [4/16] 0.0, 128
    %82 = vxpose.xlu0.b32.cont [5/16] 0.0, 128
    %83 = vxpose.xlu0.b32.cont [6/16] 0.0, 128
    %84 = vxpose.xlu0.b32.cont [7/16] 0.0, 128
    %85 = vxpose.xlu0.b32.cont [8/16] 0.0, 128
    %86 = vxpose.xlu0.b32.cont [9/16] 0.0, 128
    %87 = vxpose.xlu0.b32.cont [10/16] 0.0, 128
    %88 = vxpose.xlu0.b32.cont [11/16] 0.0, 128
    %89 = vxpose.xlu0.b32.cont [12/16] 0.0, 128
    %90 = vxpose.xlu0.b32.cont [13/16] 0.0, 128
    %91 = vxpose.xlu0.b32.cont [14/16] 0.0, 128
    %92 = vxpose.xlu0.b32.cont [15/16] 0.0, 128
    %93 = vxpose.xlu0.b32.end [16/16] 0.0, 128
    %v94 = vpop.trf.xlu0
    %v95 = vpop.trf.xlu0
    %v96 = vpop.trf.xlu0
    %v97 = vpop.trf.xlu0
    %v98 = vpop.trf.xlu0
    %v99 = vpop.trf.xlu0
    %v100 = vpop.trf.xlu0
    %v101 = vpop.trf.xlu0
    %v102 = vpop.trf.xlu0
    %v103 = vpop.trf.xlu0
    %v104 = vpop.trf.xlu0
    %v105 = vpop.trf.xlu0
    %v106 = vpop.trf.xlu0
    %v107 = vpop.trf.xlu0
    %v108 = vpop.trf.xlu0
    %v109 = vpop.trf.xlu0
    %vm110 = vcmask 64512
    %v112 = vsel %vm110, %v94, 0
    %v115 = vsel %vm110, %v95, 0
    %117 = vmatprep.subr.mxu0 0.0
    %118 = vmatpush1.msra.mxu0 %v66
    %119 = vmatprep.subr.mxu0 0.0
    %120 = vmatpush1.msra.mxu0 0.0
    %121 = vmatprep.subr.mxu0 0.0
    %122 = vmatpush1.msra.mxu0 0.0
    %123 = vmatprep.subr.mxu0 0.0
    %124 = vmatpush1.msra.mxu0 0.0
    %125 = vmatprep.subr.mxu0 0.0
    %126 = vmatpush1.msra.mxu0 0.0
    %127 = vmatprep.subr.mxu0 0.0
    %128 = vmatpush1.msra.mxu0 0.0
    %129 = vmatprep.subr.mxu0 0.0
    %130 = vmatpush1.msra.mxu0 0.0
    %131 = vmatprep.subr.mxu0 0.0
    %132 = vmatpush1.msra.mxu0 0.0
    %133 = vmatprep.subr.mxu0 0.0
    %134 = vmatpush1.msra.mxu0 0.0
    %135 = vmatprep.subr.mxu0 0.0
    %136 = vmatpush1.msra.mxu0 0.0
    %137 = vmatprep.subr.mxu0 0.0
    %138 = vmatpush1.msra.mxu0 0.0
    %139 = vmatprep.subr.mxu0 0.0
    %140 = vmatpush1.msra.mxu0 0.0
    %141 = vmatprep.subr.mxu0 0.0
    %142 = vmatpush1.msra.mxu0 0.0
    %143 = vmatprep.subr.mxu0 0.0
    %144 = vmatpush1.msra.mxu0 0.0
    %145 = vmatprep.subr.mxu0 0.0
    %146 = vmatpush1.msra.mxu0 0.0
    %147 = vmatprep.subr.mxu0 0.0
    %148 = vmatpush1.msra.mxu0 0.0
    %149 = vmatprep.subr.mxu0 0.0
    %150 = vmatpush1.msra.mxu0 0.0
    %151 = vmatprep.subr.mxu0 0.0
    %152 = vmatpush1.msra.mxu0 0.0
    %153 = vmatprep.subr.mxu0 0.0
    %154 = vmatpush1.msra.mxu0 0.0
    %155 = vmatprep.subr.mxu0 0.0
    %156 = vmatpush1.msra.mxu0 0.0
    %157 = vmatprep.subr.mxu0 0.0
    %158 = vmatpush1.msra.mxu0 0.0
    %159 = vmatprep.subr.mxu0 0.0
    %160 = vmatpush1.msra.mxu0 0.0
    %161 = vmatprep.subr.mxu0 0.0
    %162 = vmatpush1.msra.mxu0 0.0
    %163 = vmatprep.subr.mxu0 0.0
    %164 = vmatpush1.msra.mxu0 0.0
    %165 = vmatprep.subr.mxu0 0.0
    %166 = vmatpush1.msra.mxu0 0.0
    %167 = vmatprep.subr.mxu0 0.0
    %168 = vmatpush1.msra.mxu0 0.0
    %169 = vmatprep.subr.mxu0 0.0
    %170 = vmatpush1.msra.mxu0 0.0
    %171 = vmatprep.subr.mxu0 0.0
    %172 = vmatpush1.msra.mxu0 0.0
    %173 = vmatprep.subr.mxu0 0.0
    %174 = vmatpush1.msra.mxu0 0.0
    %175 = vmatprep.subr.mxu0 0.0
    %176 = vmatpush1.msra.mxu0 0.0
    %177 = vmatprep.subr.mxu0 0.0
    %178 = vmatpush1.msra.mxu0 0.0
    %179 = vmatprep.subr.mxu0 0.0
    %180 = vmatpush1.msra.mxu0 0.0
    %181 = vmatprep.mubr.f32.mxu0 0.0
    %182 = vmatmul.mubr.f32.gmra.mrb[0].mxu0 %v112
    %v183 = vpop.f32.mrb[0].mxu0
    %v184 = vadd.f32 %v76, %v183
    %v185 = vpop.f32.mrb[0].mxu0
    %186 = vmatprep.mubr.f32.mxu0 0.0
    %187 = vmatmul.mubr.f32.gmra.mrb[0].mxu0 %v115
    %v188 = vpop.f32.mrb[0].mxu0
    %v189 = vadd.f32 %v76, %v188
    %v190 = vpop.f32.mrb[0].mxu0
    %191 = vdwg.mxu0
    %192 = vxpose.xlu0.b32.start [1/16] %v63, 128
    %193 = vxpose.xlu0.b32.cont [2/16] 0.0, 128
    %194 = vxpose.xlu0.b32.cont [3/16] 0.0, 128
    %195 = vxpose.xlu0.b32.cont [4/16] 0.0, 128
    %196 = vxpose.xlu0.b32.cont [5/16] 0.0, 128
    %197 = vxpose.xlu0.b32.cont [6/16] 0.0, 128
    %198 = vxpose.xlu0.b32.cont [7/16] 0.0, 128
    %199 = vxpose.xlu0.b32.cont [8/16] 0.0, 128
    %200 = vxpose.xlu0.b32.cont [9/16] 0.0, 128
    %201 = vxpose.xlu0.b32.cont [10/16] 0.0, 128
    %202 = vxpose.xlu0.b32.cont [11/16] 0.0, 128
    %203 = vxpose.xlu0.b32.cont [12/16] 0.0, 128
    %204 = vxpose.xlu0.b32.cont [13/16] 0.0, 128
    %205 = vxpose.xlu0.b32.cont [14/16] 0.0, 128
    %206 = vxpose.xlu0.b32.cont [15/16] 0.0, 128
    %207 = vxpose.xlu0.b32.end [16/16] 0.0, 128
    %v208 = vpop.trf.xlu0
    %v209 = vpop.trf.xlu0
    %v210 = vpop.trf.xlu0
    %v211 = vpop.trf.xlu0
    %v212 = vpop.trf.xlu0
    %v213 = vpop.trf.xlu0
    %v214 = vpop.trf.xlu0
    %v215 = vpop.trf.xlu0
    %v216 = vpop.trf.xlu0
    %v217 = vpop.trf.xlu0
    %v218 = vpop.trf.xlu0
    %v219 = vpop.trf.xlu0
    %v220 = vpop.trf.xlu0
    %v221 = vpop.trf.xlu0
    %v222 = vpop.trf.xlu0
    %v223 = vpop.trf.xlu0
    %v225 = vsel %vm110, %v208, 0
    %v228 = vsel %vm110, %v209, 0
    %230 = vmatprep.subr.mxu0 0.0
    %231 = vmatpush1.msra.mxu0 %v66
    %232 = vmatprep.subr.mxu0 0.0
    %233 = vmatpush1.msra.mxu0 0.0
    %234 = vmatprep.subr.mxu0 0.0
    %235 = vmatpush1.msra.mxu0 0.0
    %236 = vmatprep.subr.mxu0 0.0
    %237 = vmatpush1.msra.mxu0 0.0
    %238 = vmatprep.subr.mxu0 0.0
    %239 = vmatpush1.msra.mxu0 0.0
    %240 = vmatprep.subr.mxu0 0.0
    %241 = vmatpush1.msra.mxu0 0.0
    %242 = vmatprep.subr.mxu0 0.0
    %243 = vmatpush1.msra.mxu0 0.0
    %244 = vmatprep.subr.mxu0 0.0
    %245 = vmatpush1.msra.mxu0 0.0
    %246 = vmatprep.subr.mxu0 0.0
    %247 = vmatpush1.msra.mxu0 0.0
    %248 = vmatprep.subr.mxu0 0.0
    %249 = vmatpush1.msra.mxu0 0.0
    %250 = vmatprep.subr.mxu0 0.0
    %251 = vmatpush1.msra.mxu0 0.0
    %252 = vmatprep.subr.mxu0 0.0
    %253 = vmatpush1.msra.mxu0 0.0
    %254 = vmatprep.subr.mxu0 0.0
    %255 = vmatpush1.msra.mxu0 0.0
    %256 = vmatprep.subr.mxu0 0.0
    %257 = vmatpush1.msra.mxu0 0.0
    %258 = vmatprep.subr.mxu0 0.0
    %259 = vmatpush1.msra.mxu0 0.0
    %260 = vmatprep.subr.mxu0 0.0
    %261 = vmatpush1.msra.mxu0 0.0
    %262 = vmatprep.subr.mxu0 0.0
    %263 = vmatpush1.msra.mxu0 0.0
    %264 = vmatprep.subr.mxu0 0.0
    %265 = vmatpush1.msra.mxu0 0.0
    %266 = vmatprep.subr.mxu0 0.0
    %267 = vmatpush1.msra.mxu0 0.0
    %268 = vmatprep.subr.mxu0 0.0
    %269 = vmatpush1.msra.mxu0 0.0
    %270 = vmatprep.subr.mxu0 0.0
    %271 = vmatpush1.msra.mxu0 0.0
    %272 = vmatprep.subr.mxu0 0.0
    %273 = vmatpush1.msra.mxu0 0.0
    %274 = vmatprep.subr.mxu0 0.0
    %275 = vmatpush1.msra.mxu0 0.0
    %276 = vmatprep.subr.mxu0 0.0
    %277 = vmatpush1.msra.mxu0 0.0
    %278 = vmatprep.subr.mxu0 0.0
    %279 = vmatpush1.msra.mxu0 0.0
    %280 = vmatprep.subr.mxu0 0.0
    %281 = vmatpush1.msra.mxu0 0.0
    %282 = vmatprep.subr.mxu0 0.0
    %283 = vmatpush1.msra.mxu0 0.0
    %284 = vmatprep.subr.mxu0 0.0
    %285 = vmatpush1.msra.mxu0 0.0
    %286 = vmatprep.subr.mxu0 0.0
    %287 = vmatpush1.msra.mxu0 0.0
    %288 = vmatprep.subr.mxu0 0.0
    %289 = vmatpush1.msra.mxu0 0.0
    %290 = vmatprep.subr.mxu0 0.0
    %291 = vmatpush1.msra.mxu0 0.0
    %292 = vmatprep.subr.mxu0 0.0
    %293 = vmatpush1.msra.mxu0 0.0
    %294 = vmatprep.mubr.f32.mxu0 0.0
    %295 = vmatmul.mubr.f32.gmra.mrb[0].mxu0 %v225
    %v296 = vpop.f32.mrb[0].mxu0
    %v297 = vadd.f32 %v76, %v296
    %v298 = vpop.f32.mrb[0].mxu0
    %299 = vmatprep.mubr.f32.mxu0 0.0
    %300 = vmatmul.mubr.f32.gmra.mrb[0].mxu0 %v228
    %v301 = vpop.f32.mrb[0].mxu0
    %v302 = vadd.f32 %v76, %v301
    %v303 = vpop.f32.mrb[0].mxu0
    %304 = vdwg.mxu0
    %v306 = vrot.slane %v297, 7
    %vm308 = vcmask 1040384
    %v309 = vsel %vm308, %v184, %v306
    %vm310 = vcmask 261120
    %v312 = vsel %vm310, 0.0, 0
    %314 = vmatprep.subr.mxu0 0.0
    %315 = vmatpush1.msra.mxu0 %v67
    %316 = vmatprep.subr.mxu0 0.0
    %317 = vmatpush1.msra.mxu0 %v68
    %318 = vmatprep.subr.mxu0 0.0
    %319 = vmatpush1.msra.mxu0 %v69
    %320 = vmatprep.subr.mxu0 0.0
    %321 = vmatpush1.msra.mxu0 %v70
    %322 = vmatprep.subr.mxu0 0.0
    %323 = vmatpush1.msra.mxu0 0.0
    %324 = vmatprep.subr.mxu0 0.0
    %325 = vmatpush1.msra.mxu0 0.0
    %326 = vmatprep.subr.mxu0 0.0
    %327 = vmatpush1.msra.mxu0 0.0
    %328 = vmatprep.subr.mxu0 0.0
    %329 = vmatpush1.msra.mxu0 0.0
    %330 = vmatprep.subr.mxu0 0.0
    %331 = vmatpush1.msra.mxu0 0.0
    %332 = vmatprep.subr.mxu0 0.0
    %333 = vmatpush1.msra.mxu0 0.0
    %334 = vmatprep.subr.mxu0 0.0
    %335 = vmatpush1.msra.mxu0 0.0
    %336 = vmatprep.subr.mxu0 0.0
    %337 = vmatpush1.msra.mxu0 0.0
    %338 = vmatprep.subr.mxu0 0.0
    %339 = vmatpush1.msra.mxu0 0.0
    %340 = vmatprep.subr.mxu0 0.0
    %341 = vmatpush1.msra.mxu0 0.0
    %342 = vmatprep.subr.mxu0 0.0
    %343 = vmatpush1.msra.mxu0 0.0
    %344 = vmatprep.subr.mxu0 0.0
    %345 = vmatpush1.msra.mxu0 0.0
    %346 = vmatprep.subr.mxu0 0.0
    %347 = vmatpush1.msra.mxu0 0.0
    %348 = vmatprep.subr.mxu0 0.0
    %349 = vmatpush1.msra.mxu0 0.0
    %350 = vmatprep.subr.mxu0 0.0
    %351 = vmatpush1.msra.mxu0 0.0
    %352 = vmatprep.subr.mxu0 0.0
    %353 = vmatpush1.msra.mxu0 0.0
    %354 = vmatprep.subr.mxu0 0.0
    %355 = vmatpush1.msra.mxu0 0.0
    %356 = vmatprep.subr.mxu0 0.0
    %357 = vmatpush1.msra.mxu0 0.0
    %358 = vmatprep.subr.mxu0 0.0
    %359 = vmatpush1.msra.mxu0 0.0
    %360 = vmatprep.subr.mxu0 0.0
    %361 = vmatpush1.msra.mxu0 0.0
    %362 = vmatprep.subr.mxu0 0.0
    %363 = vmatpush1.msra.mxu0 0.0
    %364 = vmatprep.subr.mxu0 0.0
    %365 = vmatpush1.msra.mxu0 0.0
    %366 = vmatprep.subr.mxu0 0.0
    %367 = vmatpush1.msra.mxu0 0.0
    %368 = vmatprep.subr.mxu0 0.0
    %369 = vmatpush1.msra.mxu0 0.0
    %370 = vmatprep.subr.mxu0 0.0
    %371 = vmatpush1.msra.mxu0 0.0
    %372 = vmatprep.subr.mxu0 0.0
    %373 = vmatpush1.msra.mxu0 0.0
    %374 = vmatprep.subr.mxu0 0.0
    %375 = vmatpush1.msra.mxu0 0.0
    %376 = vmatprep.subr.mxu0 0.0
    %377 = vmatpush1.msra.mxu0 0.0
    %378 = vmatprep.mubr.f32.mxu0 0.0
    %379 = vmatmul.mubr.f32.gmra.mrb[0].mxu0 %v312
    %v380 = vpop.f32.mrb[0].mxu0
    %v381 = vadd.f32 0.0, %v380
    %v382 = vpop.f32.mrb[0].mxu0
    %383 = vdwg.mxu0
    %v384 = vadd.f32 %v309, %v381
    %v385 = vxor.u32 %v384, 2147483648
    %v386 = vmul.f32 %v385, 1.442695
    %v387 = vpow.pop %v386
    %v388 = vadd.f32 %v387, 1.0
    %v389 = vrcp.pop %v388
    %v390 = vmul.f32 1.0, %v389
    %v391 = vtanh.pop %v384
    %v392 = vmul.f32 %v390, 0.0
    %394 = vrot.lane.b32.xlu0 %v391, 64
    %v395 = vpop.permute.xlu0 %394
    %v397 = vmul.f32 %v390, %v395
    %399 = vrot.lane.b32.xlu0 %v397, 32
    %v400 = vpop.permute.xlu0 %399
    %v402 = vadd.f32 %v392, %v400
    %v403 = vtanh.pop %v402
    %405 = vrot.lane.b32.xlu0 %v403, 64
    %v406 = vpop.permute.xlu0 %405
    %v408 = vmul.f32 %v390, %v406
    %v410 = vrot.slane %v184, 1
    %v412 = vsel %vm308, %v410, %v297
    %414 = vrot.lane.b32.xlu0 %v408, 32
    %v415 = vpop.permute.xlu0 %414
    %v416 = vsel %vm310, %v415, 0
    %418 = vmatprep.subr.mxu0 0.0
    %419 = vmatpush1.msra.mxu0 %v67
    %420 = vmatprep.subr.mxu0 0.0
    %421 = vmatpush1.msra.mxu0 %v68
    %422 = vmatprep.subr.mxu0 0.0
    %423 = vmatpush1.msra.mxu0 %v69
    %424 = vmatprep.subr.mxu0 0.0
    %425 = vmatpush1.msra.mxu0 %v70
    %426 = vmatprep.subr.mxu0 0.0
    %427 = vmatpush1.msra.mxu0 0.0
    %428 = vmatprep.subr.mxu0 0.0
    %429 = vmatpush1.msra.mxu0 0.0
    %430 = vmatprep.subr.mxu0 0.0
    %431 = vmatpush1.msra.mxu0 0.0
    %432 = vmatprep.subr.mxu0 0.0
    %433 = vmatpush1.msra.mxu0 0.0
    %434 = vmatprep.subr.mxu0 0.0
    %435 = vmatpush1.msra.mxu0 0.0
    %436 = vmatprep.subr.mxu0 0.0
    %437 = vmatpush1.msra.mxu0 0.0
    %438 = vmatprep.subr.mxu0 0.0
    %439 = vmatpush1.msra.mxu0 0.0
    %440 = vmatprep.subr.mxu0 0.0
    %441 = vmatpush1.msra.mxu0 0.0
    %442 = vmatprep.subr.mxu0 0.0
    %443 = vmatpush1.msra.mxu0 0.0
    %444 = vmatprep.subr.mxu0 0.0
    %445 = vmatpush1.msra.mxu0 0.0
    %446 = vmatprep.subr.mxu0 0.0
    %447 = vmatpush1.msra.mxu0 0.0
    %448 = vmatprep.subr.mxu0 0.0
    %449 = vmatpush1.msra.mxu0 0.0
    %450 = vmatprep.subr.mxu0 0.0
    %451 = vmatpush1.msra.mxu0 0.0
    %452 = vmatprep.subr.mxu0 0.0
    %453 = vmatpush1.msra.mxu0 0.0
    %454 = vmatprep.subr.mxu0 0.0
    %455 = vmatpush1.msra.mxu0 0.0
    %456 = vmatprep.subr.mxu0 0.0
    %457 = vmatpush1.msra.mxu0 0.0
    %458 = vmatprep.subr.mxu0 0.0
    %459 = vmatpush1.msra.mxu0 0.0
    %460 = vmatprep.subr.mxu0 0.0
    %461 = vmatpush1.msra.mxu0 0.0
    %462 = vmatprep.subr.mxu0 0.0
    %463 = vmatpush1.msra.mxu0 0.0
    %464 = vmatprep.subr.mxu0 0.0
    %465 = vmatpush1.msra.mxu0 0.0
    %466 = vmatprep.subr.mxu0 0.0
    %467 = vmatpush1.msra.mxu0 0.0
    %468 = vmatprep.subr.mxu0 0.0
    %469 = vmatpush1.msra.mxu0 0.0
    %470 = vmatprep.subr.mxu0 0.0
    %471 = vmatpush1.msra.mxu0 0.0
    %472 = vmatprep.subr.mxu0 0.0
    %473 = vmatpush1.msra.mxu0 0.0
    %474 = vmatprep.subr.mxu0 0.0
    %475 = vmatpush1.msra.mxu0 0.0
    %476 = vmatprep.subr.mxu0 0.0
    %477 = vmatpush1.msra.mxu0 0.0
    %478 = vmatprep.subr.mxu0 0.0
    %479 = vmatpush1.msra.mxu0 0.0
    %480 = vmatprep.subr.mxu0 0.0
    %481 = vmatpush1.msra.mxu0 0.0
    %482 = vmatprep.mubr.f32.mxu0 0.0
    %483 = vmatmul.mubr.f32.gmra.mrb[0].mxu0 %v416
    %v484 = vpop.f32.mrb[0].mxu0
    %v485 = vadd.f32 0.0, %v484
    %v486 = vpop.f32.mrb[0].mxu0
    %487 = vdwg.mxu0
    %v488 = vadd.f32 %v412, %v485
    %v489 = vxor.u32 %v488, 2147483648
    %v490 = vmul.f32 %v489, 1.442695
    %v491 = vpow.pop %v490
    %v492 = vadd.f32 %v491, 1.0
    %v493 = vrcp.pop %v492
    %v494 = vmul.f32 1.0, %v493
    %v495 = vtanh.pop %v488
    %v496 = vmul.f32 %v494, %v402
    %498 = vrot.lane.b32.xlu0 %v495, 64
    %v499 = vpop.permute.xlu0 %498
    %v501 = vmul.f32 %v494, %v499
    %503 = vrot.lane.b32.xlu0 %v501, 32
    %v504 = vpop.permute.xlu0 %503
    %v506 = vadd.f32 %v496, %v504
    %v507 = vtanh.pop %v506
    %509 = vrot.lane.b32.xlu0 %v507, 64
    %v510 = vpop.permute.xlu0 %509
    %v512 = vmul.f32 %v494, %v510
    %v513 = vrot.slane %v184, 2
    %v515 = vrot.slane %v297, 1
    %v517 = vsel %vm308, %v513, %v515
    %519 = vrot.lane.b32.xlu0 %v512, 32
    %v520 = vpop.permute.xlu0 %519
    %v521 = vsel %vm310, %v520, 0
    %523 = vmatprep.subr.mxu0 0.0
    %524 = vmatpush1.msra.mxu0 %v67
    %525 = vmatprep.subr.mxu0 0.0
    %526 = vmatpush1.msra.mxu0 %v68
    %527 = vmatprep.subr.mxu0 0.0
    %528 = vmatpush1.msra.mxu0 %v69
    %529 = vmatprep.subr.mxu0 0.0
    %530 = vmatpush1.msra.mxu0 %v70
    %531 = vmatprep.subr.mxu0 0.0
    %532 = vmatpush1.msra.mxu0 0.0
    %533 = vmatprep.subr.mxu0 0.0
    %534 = vmatpush1.msra.mxu0 0.0
    %535 = vmatprep.subr.mxu0 0.0
    %536 = vmatpush1.msra.mxu0 0.0
    %537 = vmatprep.subr.mxu0 0.0
    %538 = vmatpush1.msra.mxu0 0.0
    %539 = vmatprep.subr.mxu0 0.0
    %540 = vmatpush1.msra.mxu0 0.0
    %541 = vmatprep.subr.mxu0 0.0
    %542 = vmatpush1.msra.mxu0 0.0
    %543 = vmatprep.subr.mxu0 0.0
    %544 = vmatpush1.msra.mxu0 0.0
    %545 = vmatprep.subr.mxu0 0.0
    %546 = vmatpush1.msra.mxu0 0.0
    %547 = vmatprep.subr.mxu0 0.0
    %548 = vmatpush1.msra.mxu0 0.0
    %549 = vmatprep.subr.mxu0 0.0
    %550 = vmatpush1.msra.mxu0 0.0
    %551 = vmatprep.subr.mxu0 0.0
    %552 = vmatpush1.msra.mxu0 0.0
    %553 = vmatprep.subr.mxu0 0.0
    %554 = vmatpush1.msra.mxu0 0.0
    %555 = vmatprep.subr.mxu0 0.0
    %556 = vmatpush1.msra.mxu0 0.0
    %557 = vmatprep.subr.mxu0 0.0
    %558 = vmatpush1.msra.mxu0 0.0
    %559 = vmatprep.subr.mxu0 0.0
    %560 = vmatpush1.msra.mxu0 0.0
    %561 = vmatprep.subr.mxu0 0.0
    %562 = vmatpush1.msra.mxu0 0.0
    %563 = vmatprep.subr.mxu0 0.0
    %564 = vmatpush1.msra.mxu0 0.0
    %565 = vmatprep.subr.mxu0 0.0
    %566 = vmatpush1.msra.mxu0 0.0
    %567 = vmatprep.subr.mxu0 0.0
    %568 = vmatpush1.msra.mxu0 0.0
    %569 = vmatprep.subr.mxu0 0.0
    %570 = vmatpush1.msra.mxu0 0.0
    %571 = vmatprep.subr.mxu0 0.0
    %572 = vmatpush1.msra.mxu0 0.0
    %573 = vmatprep.subr.mxu0 0.0
    %574 = vmatpush1.msra.mxu0 0.0
    %575 = vmatprep.subr.mxu0 0.0
    %576 = vmatpush1.msra.mxu0 0.0
    %577 = vmatprep.subr.mxu0 0.0
    %578 = vmatpush1.msra.mxu0 0.0
    %579 = vmatprep.subr.mxu0 0.0
    %580 = vmatpush1.msra.mxu0 0.0
    %581 = vmatprep.subr.mxu0 0.0
    %582 = vmatpush1.msra.mxu0 0.0
    %583 = vmatprep.subr.mxu0 0.0
    %584 = vmatpush1.msra.mxu0 0.0
    %585 = vmatprep.subr.mxu0 0.0
    %586 = vmatpush1.msra.mxu0 0.0
    %587 = vmatprep.mubr.f32.mxu0 0.0
    %588 = vmatmul.mubr.f32.gmra.mrb[0].mxu0 %v521
    %v589 = vpop.f32.mrb[0].mxu0
    %v590 = vadd.f32 0.0, %v589
    %v591 = vpop.f32.mrb[0].mxu0
    %592 = vdwg.mxu0
    %v593 = vadd.f32 %v517, %v590
    %v594 = vxor.u32 %v593, 2147483648
    %v595 = vmul.f32 %v594, 1.442695
    %v596 = vpow.pop %v595
    %v597 = vadd.f32 %v596, 1.0
    %v598 = vrcp.pop %v597
    %v599 = vmul.f32 1.0, %v598
    %v600 = vtanh.pop %v593
    %v601 = vmul.f32 %v599, %v506
    %603 = vrot.lane.b32.xlu0 %v600, 64
    %v604 = vpop.permute.xlu0 %603
    %v606 = vmul.f32 %v599, %v604
    %608 = vrot.lane.b32.xlu0 %v606, 32
    %v609 = vpop.permute.xlu0 %608
    %v611 = vadd.f32 %v601, %v609
    %v612 = vtanh.pop %v611
    %614 = vrot.lane.b32.xlu0 %v612, 64
    %v615 = vpop.permute.xlu0 %614
    %v617 = vmul.f32 %v599, %v615
    %v618 = vrot.slane %v184, 3
    %v620 = vrot.slane %v297, 2
    %v622 = vsel %vm308, %v618, %v620
    %624 = vrot.lane.b32.xlu0 %v617, 32
    %v625 = vpop.permute.xlu0 %624
    %v626 = vsel %vm310, %v625, 0
    %628 = vmatprep.subr.mxu0 0.0
    %629 = vmatpush1.msra.mxu0 %v67
    %630 = vmatprep.subr.mxu0 0.0
    %631 = vmatpush1.msra.mxu0 %v68
    %632 = vmatprep.subr.mxu0 0.0
    %633 = vmatpush1.msra.mxu0 %v69
    %634 = vmatprep.subr.mxu0 0.0
    %635 = vmatpush1.msra.mxu0 %v70
    %636 = vmatprep.subr.mxu0 0.0
    %637 = vmatpush1.msra.mxu0 0.0
    %638 = vmatprep.subr.mxu0 0.0
    %639 = vmatpush1.msra.mxu0 0.0
    %640 = vmatprep.subr.mxu0 0.0
    %641 = vmatpush1.msra.mxu0 0.0
    %642 = vmatprep.subr.mxu0 0.0
    %643 = vmatpush1.msra.mxu0 0.0
    %644 = vmatprep.subr.mxu0 0.0
    %645 = vmatpush1.msra.mxu0 0.0
    %646 = vmatprep.subr.mxu0 0.0
    %647 = vmatpush1.msra.mxu0 0.0
    %648 = vmatprep.subr.mxu0 0.0
    %649 = vmatpush1.msra.mxu0 0.0
    %650 = vmatprep.subr.mxu0 0.0
    %651 = vmatpush1.msra.mxu0 0.0
    %652 = vmatprep.subr.mxu0 0.0
    %653 = vmatpush1.msra.mxu0 0.0
    %654 = vmatprep.subr.mxu0 0.0
    %655 = vmatpush1.msra.mxu0 0.0
    %656 = vmatprep.subr.mxu0 0.0
    %657 = vmatpush1.msra.mxu0 0.0
    %658 = vmatprep.subr.mxu0 0.0
    %659 = vmatpush1.msra.mxu0 0.0
    %660 = vmatprep.subr.mxu0 0.0
    %661 = vmatpush1.msra.mxu0 0.0
    %662 = vmatprep.subr.mxu0 0.0
    %663 = vmatpush1.msra.mxu0 0.0
    %664 = vmatprep.subr.mxu0 0.0
    %665 = vmatpush1.msra.mxu0 0.0
    %666 = vmatprep.subr.mxu0 0.0
    %667 = vmatpush1.msra.mxu0 0.0
    %668 = vmatprep.subr.mxu0 0.0
    %669 = vmatpush1.msra.mxu0 0.0
    %670 = vmatprep.subr.mxu0 0.0
    %671 = vmatpush1.msra.mxu0 0.0
    %672 = vmatprep.subr.mxu0 0.0
    %673 = vmatpush1.msra.mxu0 0.0
    %674 = vmatprep.subr.mxu0 0.0
    %675 = vmatpush1.msra.mxu0 0.0
    %676 = vmatprep.subr.mxu0 0.0
    %677 = vmatpush1.msra.mxu0 0.0
    %678 = vmatprep.subr.mxu0 0.0
    %679 = vmatpush1.msra.mxu0 0.0
    %680 = vmatprep.subr.mxu0 0.0
    %681 = vmatpush1.msra.mxu0 0.0
    %682 = vmatprep.subr.mxu0 0.0
    %683 = vmatpush1.msra.mxu0 0.0
    %684 = vmatprep.subr.mxu0 0.0
    %685 = vmatpush1.msra.mxu0 0.0
    %686 = vmatprep.subr.mxu0 0.0
    %687 = vmatpush1.msra.mxu0 0.0
    %688 = vmatprep.subr.mxu0 0.0
    %689 = vmatpush1.msra.mxu0 0.0
    %690 = vmatprep.subr.mxu0 0.0
    %691 = vmatpush1.msra.mxu0 0.0
    %692 = vmatprep.mubr.f32.mxu0 0.0
    %693 = vmatmul.mubr.f32.gmra.mrb[0].mxu0 %v626
    %v694 = vpop.f32.mrb[0].mxu0
    %v695 = vadd.f32 0.0, %v694
    %v696 = vpop.f32.mrb[0].mxu0
    %697 = vdwg.mxu0
    %v698 = vadd.f32 %v622, %v695
    %v699 = vxor.u32 %v698, 2147483648
    %v700 = vmul.f32 %v699, 1.442695
    %v701 = vpow.pop %v700
    %v702 = vadd.f32 %v701, 1.0
    %v703 = vrcp.pop %v702
    %v704 = vmul.f32 1.0, %v703
    %v705 = vtanh.pop %v698
    %v706 = vmul.f32 %v704, %v611
    %708 = vrot.lane.b32.xlu0 %v705, 64
    %v709 = vpop.permute.xlu0 %708
    %v711 = vmul.f32 %v704, %v709
    %713 = vrot.lane.b32.xlu0 %v711, 32
    %v714 = vpop.permute.xlu0 %713
    %v716 = vadd.f32 %v706, %v714
    %v717 = vtanh.pop %v716
    %719 = vrot.lane.b32.xlu0 %v717, 64
    %v720 = vpop.permute.xlu0 %719
    %v722 = vmul.f32 %v704, %v720
    %v723 = vrot.slane %v184, 4
    %v725 = vrot.slane %v297, 3
    %v727 = vsel %vm308, %v723, %v725
    %729 = vrot.lane.b32.xlu0 %v722, 32
    %v730 = vpop.permute.xlu0 %729
    %v731 = vsel %vm310, %v730, 0
    %733 = vmatprep.subr.mxu0 0.0
    %734 = vmatpush1.msra.mxu0 %v67
    %735 = vmatprep.subr.mxu0 0.0
    %736 = vmatpush1.msra.mxu0 %v68
    %737 = vmatprep.subr.mxu0 0.0
    %738 = vmatpush1.msra.mxu0 %v69
    %739 = vmatprep.subr.mxu0 0.0
    %740 = vmatpush1.msra.mxu0 %v70
    %741 = vmatprep.subr.mxu0 0.0
    %742 = vmatpush1.msra.mxu0 0.0
    %743 = vmatprep.subr.mxu0 0.0
    %744 = vmatpush1.msra.mxu0 0.0
    %745 = vmatprep.subr.mxu0 0.0
    %746 = vmatpush1.msra.mxu0 0.0
    %747 = vmatprep.subr.mxu0 0.0
    %748 = vmatpush1.msra.mxu0 0.0
    %749 = vmatprep.subr.mxu0 0.0
    %750 = vmatpush1.msra.mxu0 0.0
    %751 = vmatprep.subr.mxu0 0.0
    %752 = vmatpush1.msra.mxu0 0.0
    %753 = vmatprep.subr.mxu0 0.0
    %754 = vmatpush1.msra.mxu0 0.0
    %755 = vmatprep.subr.mxu0 0.0
    %756 = vmatpush1.msra.mxu0 0.0
    %757 = vmatprep.subr.mxu0 0.0
    %758 = vmatpush1.msra.mxu0 0.0
    %759 = vmatprep.subr.mxu0 0.0
    %760 = vmatpush1.msra.mxu0 0.0
    %761 = vmatprep.subr.mxu0 0.0
    %762 = vmatpush1.msra.mxu0 0.0
    %763 = vmatprep.subr.mxu0 0.0
    %764 = vmatpush1.msra.mxu0 0.0
    %765 = vmatprep.subr.mxu0 0.0
    %766 = vmatpush1.msra.mxu0 0.0
    %767 = vmatprep.subr.mxu0 0.0
    %768 = vmatpush1.msra.mxu0 0.0
    %769 = vmatprep.subr.mxu0 0.0
    %770 = vmatpush1.msra.mxu0 0.0
    %771 = vmatprep.subr.mxu0 0.0
    %772 = vmatpush1.msra.mxu0 0.0
    %773 = vmatprep.subr.mxu0 0.0
    %774 = vmatpush1.msra.mxu0 0.0
    %775 = vmatprep.subr.mxu0 0.0
    %776 = vmatpush1.msra.mxu0 0.0
    %777 = vmatprep.subr.mxu0 0.0
    %778 = vmatpush1.msra.mxu0 0.0
    %779 = vmatprep.subr.mxu0 0.0
    %780 = vmatpush1.msra.mxu0 0.0
    %781 = vmatprep.subr.mxu0 0.0
    %782 = vmatpush1.msra.mxu0 0.0
    %783 = vmatprep.subr.mxu0 0.0
    %784 = vmatpush1.msra.mxu0 0.0
    %785 = vmatprep.subr.mxu0 0.0
    %786 = vmatpush1.msra.mxu0 0.0
    %787 = vmatprep.subr.mxu0 0.0
    %788 = vmatpush1.msra.mxu0 0.0
    %789 = vmatprep.subr.mxu0 0.0
    %790 = vmatpush1.msra.mxu0 0.0
    %791 = vmatprep.subr.mxu0 0.0
    %792 = vmatpush1.msra.mxu0 0.0
    %793 = vmatprep.subr.mxu0 0.0
    %794 = vmatpush1.msra.mxu0 0.0
    %795 = vmatprep.subr.mxu0 0.0
    %796 = vmatpush1.msra.mxu0 0.0
    %797 = vmatprep.mubr.f32.mxu0 0.0
    %798 = vmatmul.mubr.f32.gmra.mrb[0].mxu0 %v731
    %v799 = vpop.f32.mrb[0].mxu0
    %v800 = vadd.f32 0.0, %v799
    %v801 = vpop.f32.mrb[0].mxu0
    %802 = vdwg.mxu0
    %v803 = vadd.f32 %v727, %v800
    %v804 = vxor.u32 %v803, 2147483648
    %v805 = vmul.f32 %v804, 1.442695
    %v806 = vpow.pop %v805
    %v807 = vadd.f32 %v806, 1.0
    %v808 = vrcp.pop %v807
    %v809 = vmul.f32 1.0, %v808
    %v810 = vtanh.pop %v803
    %v811 = vmul.f32 %v809, %v716
    %813 = vrot.lane.b32.xlu0 %v810, 64
    %v814 = vpop.permute.xlu0 %813
    %v816 = vmul.f32 %v809, %v814
    %818 = vrot.lane.b32.xlu0 %v816, 32
    %v819 = vpop.permute.xlu0 %818
    %v821 = vadd.f32 %v811, %v819
    %v822 = vtanh.pop %v821
    %824 = vrot.lane.b32.xlu0 %v822, 64
    %v825 = vpop.permute.xlu0 %824
    %v827 = vmul.f32 %v809, %v825
    %v828 = vrot.slane %v184, 5
    %v830 = vrot.slane %v297, 4
    %v832 = vsel %vm308, %v828, %v830
    %834 = vrot.lane.b32.xlu0 %v827, 32
    %v835 = vpop.permute.xlu0 %834
    %v836 = vsel %vm310, %v835, 0
    %838 = vmatprep.subr.mxu0 0.0
    %839 = vmatpush1.msra.mxu0 %v67
    %840 = vmatprep.subr.mxu0 0.0
    %841 = vmatpush1.msra.mxu0 %v68
    %842 = vmatprep.subr.mxu0 0.0
    %843 = vmatpush1.msra.mxu0 %v69
    %844 = vmatprep.subr.mxu0 0.0
    %845 = vmatpush1.msra.mxu0 %v70
    %846 = vmatprep.subr.mxu0 0.0
    %847 = vmatpush1.msra.mxu0 0.0
    %848 = vmatprep.subr.mxu0 0.0
    %849 = vmatpush1.msra.mxu0 0.0
    %850 = vmatprep.subr.mxu0 0.0
    %851 = vmatpush1.msra.mxu0 0.0
    %852 = vmatprep.subr.mxu0 0.0
    %853 = vmatpush1.msra.mxu0 0.0
    %854 = vmatprep.subr.mxu0 0.0
    %855 = vmatpush1.msra.mxu0 0.0
    %856 = vmatprep.subr.mxu0 0.0
    %857 = vmatpush1.msra.mxu0 0.0
    %858 = vmatprep.subr.mxu0 0.0
    %859 = vmatpush1.msra.mxu0 0.0
    %860 = vmatprep.subr.mxu0 0.0
    %861 = vmatpush1.msra.mxu0 0.0
    %862 = vmatprep.subr.mxu0 0.0
    %863 = vmatpush1.msra.mxu0 0.0
    %864 = vmatprep.subr.mxu0 0.0
    %865 = vmatpush1.msra.mxu0 0.0
    %866 = vmatprep.subr.mxu0 0.0
    %867 = vmatpush1.msra.mxu0 0.0
    %868 = vmatprep.subr.mxu0 0.0
    %869 = vmatpush1.msra.mxu0 0.0
    %870 = vmatprep.subr.mxu0 0.0
    %871 = vmatpush1.msra.mxu0 0.0
    %872 = vmatprep.subr.mxu0 0.0
    %873 = vmatpush1.msra.mxu0 0.0
    %874 = vmatprep.subr.mxu0 0.0
    %875 = vmatpush1.msra.mxu0 0.0
    %876 = vmatprep.subr.mxu0 0.0
    %877 = vmatpush1.msra.mxu0 0.0
    %878 = vmatprep.subr.mxu0 0.0
    %879 = vmatpush1.msra.mxu0 0.0
    %880 = vmatprep.subr.mxu0 0.0
    %881 = vmatpush1.msra.mxu0 0.0
    %882 = vmatprep.subr.mxu0 0.0
    %883 = vmatpush1.msra.mxu0 0.0
    %884 = vmatprep.subr.mxu0 0.0
    %885 = vmatpush1.msra.mxu0 0.0
    %886 = vmatprep.subr.mxu0 0.0
    %887 = vmatpush1.msra.mxu0 0.0
    %888 = vmatprep.subr.mxu0 0.0
    %889 = vmatpush1.msra.mxu0 0.0
    %890 = vmatprep.subr.mxu0 0.0
    %891 = vmatpush1.msra.mxu0 0.0
    %892 = vmatprep.subr.mxu0 0.0
    %893 = vmatpush1.msra.mxu0 0.0
    %894 = vmatprep.subr.mxu0 0.0
    %895 = vmatpush1.msra.mxu0 0.0
    %896 = vmatprep.subr.mxu0 0.0
    %897 = vmatpush1.msra.mxu0 0.0
    %898 = vmatprep.subr.mxu0 0.0
    %899 = vmatpush1.msra.mxu0 0.0
    %900 = vmatprep.subr.mxu0 0.0
    %901 = vmatpush1.msra.mxu0 0.0
    %902 = vmatprep.mubr.f32.mxu0 0.0
    %903 = vmatmul.mubr.f32.gmra.mrb[0].mxu0 %v836
    %v904 = vpop.f32.mrb[0].mxu0
    %v905 = vadd.f32 0.0, %v904
    %v906 = vpop.f32.mrb[0].mxu0
    %907 = vdwg.mxu0
    %v908 = vadd.f32 %v832, %v905
    %v909 = vxor.u32 %v908, 2147483648
    %v910 = vmul.f32 %v909, 1.442695
    %v911 = vpow.pop %v910
    %v912 = vadd.f32 %v911, 1.0
    %v913 = vrcp.pop %v912
    %v914 = vmul.f32 1.0, %v913
    %v915 = vtanh.pop %v908
    %v916 = vmul.f32 %v914, %v821
    %918 = vrot.lane.b32.xlu0 %v915, 64
    %v919 = vpop.permute.xlu0 %918
    %v921 = vmul.f32 %v914, %v919
    %923 = vrot.lane.b32.xlu0 %v921, 32
    %v924 = vpop.permute.xlu0 %923
    %v926 = vadd.f32 %v916, %v924
    %v927 = vtanh.pop %v926
    %929 = vrot.lane.b32.xlu0 %v927, 64
    %v930 = vpop.permute.xlu0 %929
    %v932 = vmul.f32 %v914, %v930
    %v933 = vrot.slane %v184, 6
    %v935 = vrot.slane %v297, 5
    %v937 = vsel %vm308, %v933, %v935
    %939 = vrot.lane.b32.xlu0 %v932, 32
    %v940 = vpop.permute.xlu0 %939
    %v941 = vsel %vm310, %v940, 0
    %943 = vmatprep.subr.mxu0 0.0
    %944 = vmatpush1.msra.mxu0 %v67
    %945 = vmatprep.subr.mxu0 0.0
    %946 = vmatpush1.msra.mxu0 %v68
    %947 = vmatprep.subr.mxu0 0.0
    %948 = vmatpush1.msra.mxu0 %v69
    %949 = vmatprep.subr.mxu0 0.0
    %950 = vmatpush1.msra.mxu0 %v70
    %951 = vmatprep.subr.mxu0 0.0
    %952 = vmatpush1.msra.mxu0 0.0
    %953 = vmatprep.subr.mxu0 0.0
    %954 = vmatpush1.msra.mxu0 0.0
    %955 = vmatprep.subr.mxu0 0.0
    %956 = vmatpush1.msra.mxu0 0.0
    %957 = vmatprep.subr.mxu0 0.0
    %958 = vmatpush1.msra.mxu0 0.0
    %959 = vmatprep.subr.mxu0 0.0
    %960 = vmatpush1.msra.mxu0 0.0
    %961 = vmatprep.subr.mxu0 0.0
    %962 = vmatpush1.msra.mxu0 0.0
    %963 = vmatprep.subr.mxu0 0.0
    %964 = vmatpush1.msra.mxu0 0.0
    %965 = vmatprep.subr.mxu0 0.0
    %966 = vmatpush1.msra.mxu0 0.0
    %967 = vmatprep.subr.mxu0 0.0
    %968 = vmatpush1.msra.mxu0 0.0
    %969 = vmatprep.subr.mxu0 0.0
    %970 = vmatpush1.msra.mxu0 0.0
    %971 = vmatprep.subr.mxu0 0.0
    %972 = vmatpush1.msra.mxu0 0.0
    %973 = vmatprep.subr.mxu0 0.0
    %974 = vmatpush1.msra.mxu0 0.0
    %975 = vmatprep.subr.mxu0 0.0
    %976 = vmatpush1.msra.mxu0 0.0
    %977 = vmatprep.subr.mxu0 0.0
    %978 = vmatpush1.msra.mxu0 0.0
    %979 = vmatprep.subr.mxu0 0.0
    %980 = vmatpush1.msra.mxu0 0.0
    %981 = vmatprep.subr.mxu0 0.0
    %982 = vmatpush1.msra.mxu0 0.0
    %983 = vmatprep.subr.mxu0 0.0
    %984 = vmatpush1.msra.mxu0 0.0
    %985 = vmatprep.subr.mxu0 0.0
    %986 = vmatpush1.msra.mxu0 0.0
    %987 = vmatprep.subr.mxu0 0.0
    %988 = vmatpush1.msra.mxu0 0.0
    %989 = vmatprep.subr.mxu0 0.0
    %990 = vmatpush1.msra.mxu0 0.0
    %991 = vmatprep.subr.mxu0 0.0
    %992 = vmatpush1.msra.mxu0 0.0
    %993 = vmatprep.subr.mxu0 0.0
    %994 = vmatpush1.msra.mxu0 0.0
    %995 = vmatprep.subr.mxu0 0.0
    %996 = vmatpush1.msra.mxu0 0.0
    %997 = vmatprep.subr.mxu0 0.0
    %998 = vmatpush1.msra.mxu0 0.0
    %999 = vmatprep.subr.mxu0 0.0
    %1000 = vmatpush1.msra.mxu0 0.0
    %1001 = vmatprep.subr.mxu0 0.0
    %1002 = vmatpush1.msra.mxu0 0.0
    %1003 = vmatprep.subr.mxu0 0.0
    %1004 = vmatpush1.msra.mxu0 0.0
    %1005 = vmatprep.subr.mxu0 0.0
    %1006 = vmatpush1.msra.mxu0 0.0
    %1007 = vmatprep.mubr.f32.mxu0 0.0
    %1008 = vmatmul.mubr.f32.gmra.mrb[0].mxu0 %v941
    %v1009 = vpop.f32.mrb[0].mxu0
    %v1010 = vadd.f32 0.0, %v1009
    %v1011 = vpop.f32.mrb[0].mxu0
    %1012 = vdwg.mxu0
    %v1013 = vadd.f32 %v937, %v1010
    %v1014 = vxor.u32 %v1013, 2147483648
    %v1015 = vmul.f32 %v1014, 1.442695
    %v1016 = vpow.pop %v1015
    %v1017 = vadd.f32 %v1016, 1.0
    %v1018 = vrcp.pop %v1017
    %v1019 = vmul.f32 1.0, %v1018
    %v1020 = vtanh.pop %v1013
    %v1021 = vmul.f32 %v1019, %v926
    %1023 = vrot.lane.b32.xlu0 %v1020, 64
    %v1024 = vpop.permute.xlu0 %1023
    %v1026 = vmul.f32 %v1019, %v1024
    %1028 = vrot.lane.b32.xlu0 %v1026, 32
    %v1029 = vpop.permute.xlu0 %1028
    %v1031 = vadd.f32 %v1021, %v1029
    %v1032 = vtanh.pop %v1031
    %1034 = vrot.lane.b32.xlu0 %v1032, 64
    %v1035 = vpop.permute.xlu0 %1034
    %v1037 = vmul.f32 %v1019, %v1035
    %v1038 = vrot.slane %v184, 7
    %v1040 = vrot.slane %v297, 6
    %v1042 = vsel %vm308, %v1038, %v1040
    %1044 = vrot.lane.b32.xlu0 %v1037, 32
    %v1045 = vpop.permute.xlu0 %1044
    %v1046 = vsel %vm310, %v1045, 0
    %1048 = vmatprep.subr.mxu0 0.0
    %1049 = vmatpush1.msra.mxu0 %v67
    %1050 = vmatprep.subr.mxu0 0.0
    %1051 = vmatpush1.msra.mxu0 %v68
    %1052 = vmatprep.subr.mxu0 0.0
    %1053 = vmatpush1.msra.mxu0 %v69
    %1054 = vmatprep.subr.mxu0 0.0
    %1055 = vmatpush1.msra.mxu0 %v70
    %1056 = vmatprep.subr.mxu0 0.0
    %1057 = vmatpush1.msra.mxu0 0.0
    %1058 = vmatprep.subr.mxu0 0.0
    %1059 = vmatpush1.msra.mxu0 0.0
    %1060 = vmatprep.subr.mxu0 0.0
    %1061 = vmatpush1.msra.mxu0 0.0
    %1062 = vmatprep.subr.mxu0 0.0
    %1063 = vmatpush1.msra.mxu0 0.0
    %1064 = vmatprep.subr.mxu0 0.0
    %1065 = vmatpush1.msra.mxu0 0.0
    %1066 = vmatprep.subr.mxu0 0.0
    %1067 = vmatpush1.msra.mxu0 0.0
    %1068 = vmatprep.subr.mxu0 0.0
    %1069 = vmatpush1.msra.mxu0 0.0
    %1070 = vmatprep.subr.mxu0 0.0
    %1071 = vmatpush1.msra.mxu0 0.0
    %1072 = vmatprep.subr.mxu0 0.0
    %1073 = vmatpush1.msra.mxu0 0.0
    %1074 = vmatprep.subr.mxu0 0.0
    %1075 = vmatpush1.msra.mxu0 0.0
    %1076 = vmatprep.subr.mxu0 0.0
    %1077 = vmatpush1.msra.mxu0 0.0
    %1078 = vmatprep.subr.mxu0 0.0
    %1079 = vmatpush1.msra.mxu0 0.0
    %1080 = vmatprep.subr.mxu0 0.0
    %1081 = vmatpush1.msra.mxu0 0.0
    %1082 = vmatprep.subr.mxu0 0.0
    %1083 = vmatpush1.msra.mxu0 0.0
    %1084 = vmatprep.subr.mxu0 0.0
    %1085 = vmatpush1.msra.mxu0 0.0
    %1086 = vmatprep.subr.mxu0 0.0
    %1087 = vmatpush1.msra.mxu0 0.0
    %1088 = vmatprep.subr.mxu0 0.0
    %1089 = vmatpush1.msra.mxu0 0.0
    %1090 = vmatprep.subr.mxu0 0.0
    %1091 = vmatpush1.msra.mxu0 0.0
    %1092 = vmatprep.subr.mxu0 0.0
    %1093 = vmatpush1.msra.mxu0 0.0
    %1094 = vmatprep.subr.mxu0 0.0
    %1095 = vmatpush1.msra.mxu0 0.0
    %1096 = vmatprep.subr.mxu0 0.0
    %1097 = vmatpush1.msra.mxu0 0.0
    %1098 = vmatprep.subr.mxu0 0.0
    %1099 = vmatpush1.msra.mxu0 0.0
    %1100 = vmatprep.subr.mxu0 0.0
    %1101 = vmatpush1.msra.mxu0 0.0
    %1102 = vmatprep.subr.mxu0 0.0
    %1103 = vmatpush1.msra.mxu0 0.0
    %1104 = vmatprep.subr.mxu0 0.0
    %1105 = vmatpush1.msra.mxu0 0.0
    %1106 = vmatprep.subr.mxu0 0.0
    %1107 = vmatpush1.msra.mxu0 0.0
    %1108 = vmatprep.subr.mxu0 0.0
    %1109 = vmatpush1.msra.mxu0 0.0
    %1110 = vmatprep.subr.mxu0 0.0
    %1111 = vmatpush1.msra.mxu0 0.0
    %1112 = vmatprep.mubr.f32.mxu0 0.0
    %1113 = vmatmul.mubr.f32.gmra.mrb[0].mxu0 %v1046
    %v1114 = vpop.f32.mrb[0].mxu0
    %v1115 = vadd.f32 0.0, %v1114
    %v1116 = vpop.f32.mrb[0].mxu0
    %1117 = vdwg.mxu0
    %v1118 = vadd.f32 %v1042, %v1115
    %v1119 = vxor.u32 %v1118, 2147483648
    %v1120 = vmul.f32 %v1119, 1.442695
    %v1121 = vpow.pop %v1120
    %v1122 = vadd.f32 %v1121, 1.0
    %v1123 = vrcp.pop %v1122
    %v1124 = vmul.f32 1.0, %v1123
    %v1125 = vtanh.pop %v1118
    %v1126 = vmul.f32 %v1124, %v1031
    %1128 = vrot.lane.b32.xlu0 %v1125, 64
    %v1129 = vpop.permute.xlu0 %1128
    %v1131 = vmul.f32 %v1124, %v1129
    %1133 = vrot.lane.b32.xlu0 %v1131, 32
    %v1134 = vpop.permute.xlu0 %1133
    %v1136 = vadd.f32 %v1126, %v1134
    %v1137 = vtanh.pop %v1136
    %1139 = vrot.lane.b32.xlu0 %v1137, 64
    %v1140 = vpop.permute.xlu0 %1139
    %v1142 = vmul.f32 %v1124, %v1140
    %v1144 = vrot.slane %v302, 7
    %v1146 = vsel %vm308, %v189, %v1144
    %1148 = vrot.lane.b32.xlu0 %v1142, 32
    %v1149 = vpop.permute.xlu0 %1148
    %v1150 = vsel %vm310, %v1149, 0
    %1152 = vmatprep.subr.mxu0 0.0
    %1153 = vmatpush1.msra.mxu0 %v67
    %1154 = vmatprep.subr.mxu0 0.0
    %1155 = vmatpush1.msra.mxu0 %v68
    %1156 = vmatprep.subr.mxu0 0.0
    %1157 = vmatpush1.msra.mxu0 %v69
    %1158 = vmatprep.subr.mxu0 0.0
    %1159 = vmatpush1.msra.mxu0 %v70
    %1160 = vmatprep.subr.mxu0 0.0
    %1161 = vmatpush1.msra.mxu0 0.0
    %1162 = vmatprep.subr.mxu0 0.0
    %1163 = vmatpush1.msra.mxu0 0.0
    %1164 = vmatprep.subr.mxu0 0.0
    %1165 = vmatpush1.msra.mxu0 0.0
    %1166 = vmatprep.subr.mxu0 0.0
    %1167 = vmatpush1.msra.mxu0 0.0
    %1168 = vmatprep.subr.mxu0 0.0
    %1169 = vmatpush1.msra.mxu0 0.0
    %1170 = vmatprep.subr.mxu0 0.0
    %1171 = vmatpush1.msra.mxu0 0.0
    %1172 = vmatprep.subr.mxu0 0.0
    %1173 = vmatpush1.msra.mxu0 0.0
    %1174 = vmatprep.subr.mxu0 0.0
    %1175 = vmatpush1.msra.mxu0 0.0
    %1176 = vmatprep.subr.mxu0 0.0
    %1177 = vmatpush1.msra.mxu0 0.0
    %1178 = vmatprep.subr.mxu0 0.0
    %1179 = vmatpush1.msra.mxu0 0.0
    %1180 = vmatprep.subr.mxu0 0.0
    %1181 = vmatpush1.msra.mxu0 0.0
    %1182 = vmatprep.subr.mxu0 0.0
    %1183 = vmatpush1.msra.mxu0 0.0
    %1184 = vmatprep.subr.mxu0 0.0
    %1185 = vmatpush1.msra.mxu0 0.0
    %1186 = vmatprep.subr.mxu0 0.0
    %1187 = vmatpush1.msra.mxu0 0.0
    %1188 = vmatprep.subr.mxu0 0.0
    %1189 = vmatpush1.msra.mxu0 0.0
    %1190 = vmatprep.subr.mxu0 0.0
    %1191 = vmatpush1.msra.mxu0 0.0
    %1192 = vmatprep.subr.mxu0 0.0
    %1193 = vmatpush1.msra.mxu0 0.0
    %1194 = vmatprep.subr.mxu0 0.0
    %1195 = vmatpush1.msra.mxu0 0.0
    %1196 = vmatprep.subr.mxu0 0.0
    %1197 = vmatpush1.msra.mxu0 0.0
    %1198 = vmatprep.subr.mxu0 0.0
    %1199 = vmatpush1.msra.mxu0 0.0
    %1200 = vmatprep.subr.mxu0 0.0
    %1201 = vmatpush1.msra.mxu0 0.0
    %1202 = vmatprep.subr.mxu0 0.0
    %1203 = vmatpush1.msra.mxu0 0.0
    %1204 = vmatprep.subr.mxu0 0.0
    %1205 = vmatpush1.msra.mxu0 0.0
    %1206 = vmatprep.subr.mxu0 0.0
    %1207 = vmatpush1.msra.mxu0 0.0
    %1208 = vmatprep.subr.mxu0 0.0
    %1209 = vmatpush1.msra.mxu0 0.0
    %1210 = vmatprep.subr.mxu0 0.0
    %1211 = vmatpush1.msra.mxu0 0.0
    %1212 = vmatprep.subr.mxu0 0.0
    %1213 = vmatpush1.msra.mxu0 0.0
    %1214 = vmatprep.subr.mxu0 0.0
    %1215 = vmatpush1.msra.mxu0 0.0
    %1216 = vmatprep.mubr.f32.mxu0 0.0
    %1217 = vmatmul.mubr.f32.gmra.mrb[0].mxu0 %v1150
    %v1218 = vpop.f32.mrb[0].mxu0
    %v1219 = vadd.f32 0.0, %v1218
    %v1220 = vpop.f32.mrb[0].mxu0
    %1221 = vdwg.mxu0
    %v1222 = vadd.f32 %v1146, %v1219
    %v1223 = vxor.u32 %v1222, 2147483648
    %v1224 = vmul.f32 %v1223, 1.442695
    %v1225 = vpow.pop %v1224
    %v1226 = vadd.f32 %v1225, 1.0
    %v1227 = vrcp.pop %v1226
    %v1228 = vmul.f32 1.0, %v1227
    %v1229 = vtanh.pop %v1222
    %v1230 = vmul.f32 %v1228, %v1136
    %1232 = vrot.lane.b32.xlu0 %v1229, 64
    %v1233 = vpop.permute.xlu0 %1232
    %v1235 = vmul.f32 %v1228, %v1233
    %1237 = vrot.lane.b32.xlu0 %v1235, 32
    %v1238 = vpop.permute.xlu0 %1237
    %v1240 = vadd.f32 %v1230, %v1238
    %v1241 = vtanh.pop %v1240
    %1243 = vrot.lane.b32.xlu0 %v1241, 64
    %v1244 = vpop.permute.xlu0 %1243
    %v1246 = vmul.f32 %v1228, %v1244
    %v1248 = vrot.slane %v189, 1
    %v1250 = vsel %vm308, %v1248, %v302
    %1252 = vrot.lane.b32.xlu0 %v1246, 32
    %v1253 = vpop.permute.xlu0 %1252
    %v1254 = vsel %vm310, %v1253, 0
    %1256 = vmatprep.subr.mxu0 0.0
    %1257 = vmatpush1.msra.mxu0 %v67
    %1258 = vmatprep.subr.mxu0 0.0
    %1259 = vmatpush1.msra.mxu0 %v68
    %1260 = vmatprep.subr.mxu0 0.0
    %1261 = vmatpush1.msra.mxu0 %v69
    %1262 = vmatprep.subr.mxu0 0.0
    %1263 = vmatpush1.msra.mxu0 %v70
    %1264 = vmatprep.subr.mxu0 0.0
    %1265 = vmatpush1.msra.mxu0 0.0
    %1266 = vmatprep.subr.mxu0 0.0
    %1267 = vmatpush1.msra.mxu0 0.0
    %1268 = vmatprep.subr.mxu0 0.0
    %1269 = vmatpush1.msra.mxu0 0.0
    %1270 = vmatprep.subr.mxu0 0.0
    %1271 = vmatpush1.msra.mxu0 0.0
    %1272 = vmatprep.subr.mxu0 0.0
    %1273 = vmatpush1.msra.mxu0 0.0
    %1274 = vmatprep.subr.mxu0 0.0
    %1275 = vmatpush1.msra.mxu0 0.0
    %1276 = vmatprep.subr.mxu0 0.0
    %1277 = vmatpush1.msra.mxu0 0.0
    %1278 = vmatprep.subr.mxu0 0.0
    %1279 = vmatpush1.msra.mxu0 0.0
    %1280 = vmatprep.subr.mxu0 0.0
    %1281 = vmatpush1.msra.mxu0 0.0
    %1282 = vmatprep.subr.mxu0 0.0
    %1283 = vmatpush1.msra.mxu0 0.0
    %1284 = vmatprep.subr.mxu0 0.0
    %1285 = vmatpush1.msra.mxu0 0.0
    %1286 = vmatprep.subr.mxu0 0.0
    %1287 = vmatpush1.msra.mxu0 0.0
    %1288 = vmatprep.subr.mxu0 0.0
    %1289 = vmatpush1.msra.mxu0 0.0
    %1290 = vmatprep.subr.mxu0 0.0
    %1291 = vmatpush1.msra.mxu0 0.0
    %1292 = vmatprep.subr.mxu0 0.0
    %1293 = vmatpush1.msra.mxu0 0.0
    %1294 = vmatprep.subr.mxu0 0.0
    %1295 = vmatpush1.msra.mxu0 0.0
    %1296 = vmatprep.subr.mxu0 0.0
    %1297 = vmatpush1.msra.mxu0 0.0
    %1298 = vmatprep.subr.mxu0 0.0
    %1299 = vmatpush1.msra.mxu0 0.0
    %1300 = vmatprep.subr.mxu0 0.0
    %1301 = vmatpush1.msra.mxu0 0.0
    %1302 = vmatprep.subr.mxu0 0.0
    %1303 = vmatpush1.msra.mxu0 0.0
    %1304 = vmatprep.subr.mxu0 0.0
    %1305 = vmatpush1.msra.mxu0 0.0
    %1306 = vmatprep.subr.mxu0 0.0
    %1307 = vmatpush1.msra.mxu0 0.0
    %1308 = vmatprep.subr.mxu0 0.0
    %1309 = vmatpush1.msra.mxu0 0.0
    %1310 = vmatprep.subr.mxu0 0.0
    %1311 = vmatpush1.msra.mxu0 0.0
    %1312 = vmatprep.subr.mxu0 0.0
    %1313 = vmatpush1.msra.mxu0 0.0
    %1314 = vmatprep.subr.mxu0 0.0
    %1315 = vmatpush1.msra.mxu0 0.0
    %1316 = vmatprep.subr.mxu0 0.0
    %1317 = vmatpush1.msra.mxu0 0.0
    %1318 = vmatprep.subr.mxu0 0.0
    %1319 = vmatpush1.msra.mxu0 0.0
    %1320 = vmatprep.mubr.f32.mxu0 0.0
    %1321 = vmatmul.mubr.f32.gmra.mrb[0].mxu0 %v1254
    %v1322 = vpop.f32.mrb[0].mxu0
    %v1323 = vadd.f32 0.0, %v1322
    %v1324 = vpop.f32.mrb[0].mxu0
    %1325 = vdwg.mxu0
    %v1326 = vadd.f32 %v1250, %v1323
    %v1327 = vxor.u32 %v1326, 2147483648
    %v1328 = vmul.f32 %v1327, 1.442695
    %v1329 = vpow.pop %v1328
    %v1330 = vadd.f32 %v1329, 1.0
    %v1331 = vrcp.pop %v1330
    %v1332 = vmul.f32 1.0, %v1331
    %v1333 = vtanh.pop %v1326
    %v1334 = vmul.f32 %v1332, %v1240
    %1336 = vrot.lane.b32.xlu0 %v1333, 64
    %v1337 = vpop.permute.xlu0 %1336
    %v1339 = vmul.f32 %v1332, %v1337
    %1341 = vrot.lane.b32.xlu0 %v1339, 32
    %v1342 = vpop.permute.xlu0 %1341
    %v1344 = vadd.f32 %v1334, %v1342
    %v1345 = vtanh.pop %v1344
    %1347 = vrot.lane.b32.xlu0 %v1345, 64
    %v1348 = vpop.permute.xlu0 %1347
    %v1350 = vmul.f32 %v1332, %v1348
    %v1351 = vrot.slane %v189, 2
    %v1353 = vrot.slane %v302, 1
    %v1355 = vsel %vm308, %v1351, %v1353
    %1357 = vrot.lane.b32.xlu0 %v1350, 32
    %v1358 = vpop.permute.xlu0 %1357
    %v1359 = vsel %vm310, %v1358, 0
    %1361 = vmatprep.subr.mxu0 0.0
    %1362 = vmatpush1.msra.mxu0 %v67
    %1363 = vmatprep.subr.mxu0 0.0
    %1364 = vmatpush1.msra.mxu0 %v68
    %1365 = vmatprep.subr.mxu0 0.0
    %1366 = vmatpush1.msra.mxu0 %v69
    %1367 = vmatprep.subr.mxu0 0.0
    %1368 = vmatpush1.msra.mxu0 %v70
    %1369 = vmatprep.subr.mxu0 0.0
    %1370 = vmatpush1.msra.mxu0 0.0
    %1371 = vmatprep.subr.mxu0 0.0
    %1372 = vmatpush1.msra.mxu0 0.0
    %1373 = vmatprep.subr.mxu0 0.0
    %1374 = vmatpush1.msra.mxu0 0.0
    %1375 = vmatprep.subr.mxu0 0.0
    %1376 = vmatpush1.msra.mxu0 0.0
    %1377 = vmatprep.subr.mxu0 0.0
    %1378 = vmatpush1.msra.mxu0 0.0
    %1379 = vmatprep.subr.mxu0 0.0
    %1380 = vmatpush1.msra.mxu0 0.0
    %1381 = vmatprep.subr.mxu0 0.0
    %1382 = vmatpush1.msra.mxu0 0.0
    %1383 = vmatprep.subr.mxu0 0.0
    %1384 = vmatpush1.msra.mxu0 0.0
    %1385 = vmatprep.subr.mxu0 0.0
    %1386 = vmatpush1.msra.mxu0 0.0
    %1387 = vmatprep.subr.mxu0 0.0
    %1388 = vmatpush1.msra.mxu0 0.0
    %1389 = vmatprep.subr.mxu0 0.0
    %1390 = vmatpush1.msra.mxu0 0.0
    %1391 = vmatprep.subr.mxu0 0.0
    %1392 = vmatpush1.msra.mxu0 0.0
    %1393 = vmatprep.subr.mxu0 0.0
    %1394 = vmatpush1.msra.mxu0 0.0
    %1395 = vmatprep.subr.mxu0 0.0
    %1396 = vmatpush1.msra.mxu0 0.0
    %1397 = vmatprep.subr.mxu0 0.0
    %1398 = vmatpush1.msra.mxu0 0.0
    %1399 = vmatprep.subr.mxu0 0.0
    %1400 = vmatpush1.msra.mxu0 0.0
    %1401 = vmatprep.subr.mxu0 0.0
    %1402 = vmatpush1.msra.mxu0 0.0
    %1403 = vmatprep.subr.mxu0 0.0
    %1404 = vmatpush1.msra.mxu0 0.0
    %1405 = vmatprep.subr.mxu0 0.0
    %1406 = vmatpush1.msra.mxu0 0.0
    %1407 = vmatprep.subr.mxu0 0.0
    %1408 = vmatpush1.msra.mxu0 0.0
    %1409 = vmatprep.subr.mxu0 0.0
    %1410 = vmatpush1.msra.mxu0 0.0
    %1411 = vmatprep.subr.mxu0 0.0
    %1412 = vmatpush1.msra.mxu0 0.0
    %1413 = vmatprep.subr.mxu0 0.0
    %1414 = vmatpush1.msra.mxu0 0.0
    %1415 = vmatprep.subr.mxu0 0.0
    %1416 = vmatpush1.msra.mxu0 0.0
    %1417 = vmatprep.subr.mxu0 0.0
    %1418 = vmatpush1.msra.mxu0 0.0
    %1419 = vmatprep.subr.mxu0 0.0
    %1420 = vmatpush1.msra.mxu0 0.0
    %1421 = vmatprep.subr.mxu0 0.0
    %1422 = vmatpush1.msra.mxu0 0.0
    %1423 = vmatprep.subr.mxu0 0.0
    %1424 = vmatpush1.msra.mxu0 0.0
    %1425 = vmatprep.mubr.f32.mxu0 0.0
    %1426 = vmatmul.mubr.f32.gmra.mrb[0].mxu0 %v1359
    %v1427 = vpop.f32.mrb[0].mxu0
    %v1428 = vadd.f32 0.0, %v1427
    %v1429 = vpop.f32.mrb[0].mxu0
    %1430 = vdwg.mxu0
    %v1431 = vadd.f32 %v1355, %v1428
    %v1432 = vxor.u32 %v1431, 2147483648
    %v1433 = vmul.f32 %v1432, 1.442695
    %v1434 = vpow.pop %v1433
    %v1435 = vadd.f32 %v1434, 1.0
    %v1436 = vrcp.pop %v1435
    %v1437 = vmul.f32 1.0, %v1436
    %v1438 = vtanh.pop %v1431
    %v1439 = vmul.f32 %v1437, %v1344
    %1441 = vrot.lane.b32.xlu0 %v1438, 64
    %v1442 = vpop.permute.xlu0 %1441
    %v1444 = vmul.f32 %v1437, %v1442
    %1446 = vrot.lane.b32.xlu0 %v1444, 32
    %v1447 = vpop.permute.xlu0 %1446
    %v1449 = vadd.f32 %v1439, %v1447
    %v1450 = vtanh.pop %v1449
    %1452 = vrot.lane.b32.xlu0 %v1450, 64
    %v1453 = vpop.permute.xlu0 %1452
    %v1455 = vmul.f32 %v1437, %v1453
    %v1456 = vrot.slane %v189, 3
    %v1458 = vrot.slane %v302, 2
    %v1460 = vsel %vm308, %v1456, %v1458
    %1462 = vrot.lane.b32.xlu0 %v1455, 32
    %v1463 = vpop.permute.xlu0 %1462
    %v1464 = vsel %vm310, %v1463, 0
    %1466 = vmatprep.subr.mxu0 0.0
    %1467 = vmatpush1.msra.mxu0 %v67
    %1468 = vmatprep.subr.mxu0 0.0
    %1469 = vmatpush1.msra.mxu0 %v68
    %1470 = vmatprep.subr.mxu0 0.0
    %1471 = vmatpush1.msra.mxu0 %v69
    %1472 = vmatprep.subr.mxu0 0.0
    %1473 = vmatpush1.msra.mxu0 %v70
    %1474 = vmatprep.subr.mxu0 0.0
    %1475 = vmatpush1.msra.mxu0 0.0
    %1476 = vmatprep.subr.mxu0 0.0
    %1477 = vmatpush1.msra.mxu0 0.0
    %1478 = vmatprep.subr.mxu0 0.0
    %1479 = vmatpush1.msra.mxu0 0.0
    %1480 = vmatprep.subr.mxu0 0.0
    %1481 = vmatpush1.msra.mxu0 0.0
    %1482 = vmatprep.subr.mxu0 0.0
    %1483 = vmatpush1.msra.mxu0 0.0
    %1484 = vmatprep.subr.mxu0 0.0
    %1485 = vmatpush1.msra.mxu0 0.0
    %1486 = vmatprep.subr.mxu0 0.0
    %1487 = vmatpush1.msra.mxu0 0.0
    %1488 = vmatprep.subr.mxu0 0.0
    %1489 = vmatpush1.msra.mxu0 0.0
    %1490 = vmatprep.subr.mxu0 0.0
    %1491 = vmatpush1.msra.mxu0 0.0
    %1492 = vmatprep.subr.mxu0 0.0
    %1493 = vmatpush1.msra.mxu0 0.0
    %1494 = vmatprep.subr.mxu0 0.0
    %1495 = vmatpush1.msra.mxu0 0.0
    %1496 = vmatprep.subr.mxu0 0.0
    %1497 = vmatpush1.msra.mxu0 0.0
    %1498 = vmatprep.subr.mxu0 0.0
    %1499 = vmatpush1.msra.mxu0 0.0
    %1500 = vmatprep.subr.mxu0 0.0
    %1501 = vmatpush1.msra.mxu0 0.0
    %1502 = vmatprep.subr.mxu0 0.0
    %1503 = vmatpush1.msra.mxu0 0.0
    %1504 = vmatprep.subr.mxu0 0.0
    %1505 = vmatpush1.msra.mxu0 0.0
    %1506 = vmatprep.subr.mxu0 0.0
    %1507 = vmatpush1.msra.mxu0 0.0
    %1508 = vmatprep.subr.mxu0 0.0
    %1509 = vmatpush1.msra.mxu0 0.0
    %1510 = vmatprep.subr.mxu0 0.0
    %1511 = vmatpush1.msra.mxu0 0.0
    %1512 = vmatprep.subr.mxu0 0.0
    %1513 = vmatpush1.msra.mxu0 0.0
    %1514 = vmatprep.subr.mxu0 0.0
    %1515 = vmatpush1.msra.mxu0 0.0
    %1516 = vmatprep.subr.mxu0 0.0
    %1517 = vmatpush1.msra.mxu0 0.0
    %1518 = vmatprep.subr.mxu0 0.0
    %1519 = vmatpush1.msra.mxu0 0.0
    %1520 = vmatprep.subr.mxu0 0.0
    %1521 = vmatpush1.msra.mxu0 0.0
    %1522 = vmatprep.subr.mxu0 0.0
    %1523 = vmatpush1.msra.mxu0 0.0
    %1524 = vmatprep.subr.mxu0 0.0
    %1525 = vmatpush1.msra.mxu0 0.0
    %1526 = vmatprep.subr.mxu0 0.0
    %1527 = vmatpush1.msra.mxu0 0.0
    %1528 = vmatprep.subr.mxu0 0.0
    %1529 = vmatpush1.msra.mxu0 0.0
    %1530 = vmatprep.mubr.f32.mxu0 0.0
    %1531 = vmatmul.mubr.f32.gmra.mrb[0].mxu0 %v1464
    %v1532 = vpop.f32.mrb[0].mxu0
    %v1533 = vadd.f32 0.0, %v1532
    %v1534 = vpop.f32.mrb[0].mxu0
    %1535 = vdwg.mxu0
    %v1536 = vadd.f32 %v1460, %v1533
    %v1537 = vxor.u32 %v1536, 2147483648
    %v1538 = vmul.f32 %v1537, 1.442695
    %v1539 = vpow.pop %v1538
    %v1540 = vadd.f32 %v1539, 1.0
    %v1541 = vrcp.pop %v1540
    %v1542 = vmul.f32 1.0, %v1541
    %v1543 = vtanh.pop %v1536
    %v1544 = vmul.f32 %v1542, %v1449
    %1546 = vrot.lane.b32.xlu0 %v1543, 64
    %v1547 = vpop.permute.xlu0 %1546
    %v1549 = vmul.f32 %v1542, %v1547
    %1551 = vrot.lane.b32.xlu0 %v1549, 32
    %v1552 = vpop.permute.xlu0 %1551
    %v1554 = vadd.f32 %v1544, %v1552
    %v1555 = vtanh.pop %v1554
    %1557 = vrot.lane.b32.xlu0 %v1555, 64
    %v1558 = vpop.permute.xlu0 %1557
    %v1560 = vmul.f32 %v1542, %v1558
    %v1561 = vrot.slane %v189, 4
    %v1563 = vrot.slane %v302, 3
    %v1565 = vsel %vm308, %v1561, %v1563
    %1567 = vrot.lane.b32.xlu0 %v1560, 32
    %v1568 = vpop.permute.xlu0 %1567
    %v1569 = vsel %vm310, %v1568, 0
    %1571 = vmatprep.subr.mxu0 0.0
    %1572 = vmatpush1.msra.mxu0 %v67
    %1573 = vmatprep.subr.mxu0 0.0
    %1574 = vmatpush1.msra.mxu0 %v68
    %1575 = vmatprep.subr.mxu0 0.0
    %1576 = vmatpush1.msra.mxu0 %v69
    %1577 = vmatprep.subr.mxu0 0.0
    %1578 = vmatpush1.msra.mxu0 %v70
    %1579 = vmatprep.subr.mxu0 0.0
    %1580 = vmatpush1.msra.mxu0 0.0
    %1581 = vmatprep.subr.mxu0 0.0
    %1582 = vmatpush1.msra.mxu0 0.0
    %1583 = vmatprep.subr.mxu0 0.0
    %1584 = vmatpush1.msra.mxu0 0.0
    %1585 = vmatprep.subr.mxu0 0.0
    %1586 = vmatpush1.msra.mxu0 0.0
    %1587 = vmatprep.subr.mxu0 0.0
    %1588 = vmatpush1.msra.mxu0 0.0
    %1589 = vmatprep.subr.mxu0 0.0
    %1590 = vmatpush1.msra.mxu0 0.0
    %1591 = vmatprep.subr.mxu0 0.0
    %1592 = vmatpush1.msra.mxu0 0.0
    %1593 = vmatprep.subr.mxu0 0.0
    %1594 = vmatpush1.msra.mxu0 0.0
    %1595 = vmatprep.subr.mxu0 0.0
    %1596 = vmatpush1.msra.mxu0 0.0
    %1597 = vmatprep.subr.mxu0 0.0
    %1598 = vmatpush1.msra.mxu0 0.0
    %1599 = vmatprep.subr.mxu0 0.0
    %1600 = vmatpush1.msra.mxu0 0.0
    %1601 = vmatprep.subr.mxu0 0.0
    %1602 = vmatpush1.msra.mxu0 0.0
    %1603 = vmatprep.subr.mxu0 0.0
    %1604 = vmatpush1.msra.mxu0 0.0
    %1605 = vmatprep.subr.mxu0 0.0
    %1606 = vmatpush1.msra.mxu0 0.0
    %1607 = vmatprep.subr.mxu0 0.0
    %1608 = vmatpush1.msra.mxu0 0.0
    %1609 = vmatprep.subr.mxu0 0.0
    %1610 = vmatpush1.msra.mxu0 0.0
    %1611 = vmatprep.subr.mxu0 0.0
    %1612 = vmatpush1.msra.mxu0 0.0
    %1613 = vmatprep.subr.mxu0 0.0
    %1614 = vmatpush1.msra.mxu0 0.0
    %1615 = vmatprep.subr.mxu0 0.0
    %1616 = vmatpush1.msra.mxu0 0.0
    %1617 = vmatprep.subr.mxu0 0.0
    %1618 = vmatpush1.msra.mxu0 0.0
    %1619 = vmatprep.subr.mxu0 0.0
    %1620 = vmatpush1.msra.mxu0 0.0
    %1621 = vmatprep.subr.mxu0 0.0
    %1622 = vmatpush1.msra.mxu0 0.0
    %1623 = vmatprep.subr.mxu0 0.0
    %1624 = vmatpush1.msra.mxu0 0.0
    %1625 = vmatprep.subr.mxu0 0.0
    %1626 = vmatpush1.msra.mxu0 0.0
    %1627 = vmatprep.subr.mxu0 0.0
    %1628 = vmatpush1.msra.mxu0 0.0
    %1629 = vmatprep.subr.mxu0 0.0
    %1630 = vmatpush1.msra.mxu0 0.0
    %1631 = vmatprep.subr.mxu0 0.0
    %1632 = vmatpush1.msra.mxu0 0.0
    %1633 = vmatprep.subr.mxu0 0.0
    %1634 = vmatpush1.msra.mxu0 0.0
    %1635 = vmatprep.mubr.f32.mxu0 0.0
    %1636 = vmatmul.mubr.f32.gmra.mrb[0].mxu0 %v1569
    %v1637 = vpop.f32.mrb[0].mxu0
    %v1638 = vadd.f32 0.0, %v1637
    %v1639 = vpop.f32.mrb[0].mxu0
    %1640 = vdwg.mxu0
    %v1641 = vadd.f32 %v1565, %v1638
    %v1642 = vxor.u32 %v1641, 2147483648
    %v1643 = vmul.f32 %v1642, 1.442695
    %v1644 = vpow.pop %v1643
    %v1645 = vadd.f32 %v1644, 1.0
    %v1646 = vrcp.pop %v1645
    %v1647 = vmul.f32 1.0, %v1646
    %v1648 = vtanh.pop %v1641
    %v1649 = vmul.f32 %v1647, %v1554
    %1651 = vrot.lane.b32.xlu0 %v1648, 64
    %v1652 = vpop.permute.xlu0 %1651
    %v1654 = vmul.f32 %v1647, %v1652
    %1656 = vrot.lane.b32.xlu0 %v1654, 32
    %v1657 = vpop.permute.xlu0 %1656
    %v1659 = vadd.f32 %v1649, %v1657
    %v1660 = vtanh.pop %v1659
    %1662 = vrot.lane.b32.xlu0 %v1660, 64
    %v1663 = vpop.permute.xlu0 %1662
    %v1665 = vmul.f32 %v1647, %v1663
    %v1666 = vrot.slane %v189, 5
    %v1668 = vrot.slane %v302, 4
    %v1670 = vsel %vm308, %v1666, %v1668
    %1672 = vrot.lane.b32.xlu0 %v1665, 32
    %v1673 = vpop.permute.xlu0 %1672
    %v1674 = vsel %vm310, %v1673, 0
    %1676 = vmatprep.subr.mxu0 0.0
    %1677 = vmatpush1.msra.mxu0 %v67
    %1678 = vmatprep.subr.mxu0 0.0
    %1679 = vmatpush1.msra.mxu0 %v68
    %1680 = vmatprep.subr.mxu0 0.0
    %1681 = vmatpush1.msra.mxu0 %v69
    %1682 = vmatprep.subr.mxu0 0.0
    %1683 = vmatpush1.msra.mxu0 %v70
    %1684 = vmatprep.subr.mxu0 0.0
    %1685 = vmatpush1.msra.mxu0 0.0
    %1686 = vmatprep.subr.mxu0 0.0
    %1687 = vmatpush1.msra.mxu0 0.0
    %1688 = vmatprep.subr.mxu0 0.0
    %1689 = vmatpush1.msra.mxu0 0.0
    %1690 = vmatprep.subr.mxu0 0.0
    %1691 = vmatpush1.msra.mxu0 0.0
    %1692 = vmatprep.subr.mxu0 0.0
    %1693 = vmatpush1.msra.mxu0 0.0
    %1694 = vmatprep.subr.mxu0 0.0
    %1695 = vmatpush1.msra.mxu0 0.0
    %1696 = vmatprep.subr.mxu0 0.0
    %1697 = vmatpush1.msra.mxu0 0.0
    %1698 = vmatprep.subr.mxu0 0.0
    %1699 = vmatpush1.msra.mxu0 0.0
    %1700 = vmatprep.subr.mxu0 0.0
    %1701 = vmatpush1.msra.mxu0 0.0
    %1702 = vmatprep.subr.mxu0 0.0
    %1703 = vmatpush1.msra.mxu0 0.0
    %1704 = vmatprep.subr.mxu0 0.0
    %1705 = vmatpush1.msra.mxu0 0.0
    %1706 = vmatprep.subr.mxu0 0.0
    %1707 = vmatpush1.msra.mxu0 0.0
    %1708 = vmatprep.subr.mxu0 0.0
    %1709 = vmatpush1.msra.mxu0 0.0
    %1710 = vmatprep.subr.mxu0 0.0
    %1711 = vmatpush1.msra.mxu0 0.0
    %1712 = vmatprep.subr.mxu0 0.0
    %1713 = vmatpush1.msra.mxu0 0.0
    %1714 = vmatprep.subr.mxu0 0.0
    %1715 = vmatpush1.msra.mxu0 0.0
    %1716 = vmatprep.subr.mxu0 0.0
    %1717 = vmatpush1.msra.mxu0 0.0
    %1718 = vmatprep.subr.mxu0 0.0
    %1719 = vmatpush1.msra.mxu0 0.0
    %1720 = vmatprep.subr.mxu0 0.0
    %1721 = vmatpush1.msra.mxu0 0.0
    %1722 = vmatprep.subr.mxu0 0.0
    %1723 = vmatpush1.msra.mxu0 0.0
    %1724 = vmatprep.subr.mxu0 0.0
    %1725 = vmatpush1.msra.mxu0 0.0
    %1726 = vmatprep.subr.mxu0 0.0
    %1727 = vmatpush1.msra.mxu0 0.0
    %1728 = vmatprep.subr.mxu0 0.0
    %1729 = vmatpush1.msra.mxu0 0.0
    %1730 = vmatprep.subr.mxu0 0.0
    %1731 = vmatpush1.msra.mxu0 0.0
    %1732 = vmatprep.subr.mxu0 0.0
    %1733 = vmatpush1.msra.mxu0 0.0
    %1734 = vmatprep.subr.mxu0 0.0
    %1735 = vmatpush1.msra.mxu0 0.0
    %1736 = vmatprep.subr.mxu0 0.0
    %1737 = vmatpush1.msra.mxu0 0.0
    %1738 = vmatprep.subr.mxu0 0.0
    %1739 = vmatpush1.msra.mxu0 0.0
    %1740 = vmatprep.mubr.f32.mxu0 0.0
    %1741 = vmatmul.mubr.f32.gmra.mrb[0].mxu0 %v1674
    %v1742 = vpop.f32.mrb[0].mxu0
    %v1743 = vadd.f32 0.0, %v1742
    %v1744 = vpop.f32.mrb[0].mxu0
    %1745 = vdwg.mxu0
    %v1746 = vadd.f32 %v1670, %v1743
    %v1747 = vxor.u32 %v1746, 2147483648
    %v1748 = vmul.f32 %v1747, 1.442695
    %v1749 = vpow.pop %v1748
    %v1750 = vadd.f32 %v1749, 1.0
    %v1751 = vrcp.pop %v1750
    %v1752 = vmul.f32 1.0, %v1751
    %v1753 = vtanh.pop %v1746
    %v1754 = vmul.f32 %v1752, %v1659
    %1756 = vrot.lane.b32.xlu0 %v1753, 64
    %v1757 = vpop.permute.xlu0 %1756
    %v1759 = vmul.f32 %v1752, %v1757
    %1761 = vrot.lane.b32.xlu0 %v1759, 32
    %v1762 = vpop.permute.xlu0 %1761
    %v1764 = vadd.f32 %v1754, %v1762
    %v1765 = vtanh.pop %v1764
    %1767 = vrot.lane.b32.xlu0 %v1765, 64
    %v1768 = vpop.permute.xlu0 %1767
    %v1770 = vmul.f32 %v1752, %v1768
    %v1771 = vrot.slane %v189, 6
    %v1773 = vrot.slane %v302, 5
    %v1775 = vsel %vm308, %v1771, %v1773
    %1777 = vrot.lane.b32.xlu0 %v1770, 32
    %v1778 = vpop.permute.xlu0 %1777
    %v1779 = vsel %vm310, %v1778, 0
    %1781 = vmatprep.subr.mxu0 0.0
    %1782 = vmatpush1.msra.mxu0 %v67
    %1783 = vmatprep.subr.mxu0 0.0
    %1784 = vmatpush1.msra.mxu0 %v68
    %1785 = vmatprep.subr.mxu0 0.0
    %1786 = vmatpush1.msra.mxu0 %v69
    %1787 = vmatprep.subr.mxu0 0.0
    %1788 = vmatpush1.msra.mxu0 %v70
    %1789 = vmatprep.subr.mxu0 0.0
    %1790 = vmatpush1.msra.mxu0 0.0
    %1791 = vmatprep.subr.mxu0 0.0
    %1792 = vmatpush1.msra.mxu0 0.0
    %1793 = vmatprep.subr.mxu0 0.0
    %1794 = vmatpush1.msra.mxu0 0.0
    %1795 = vmatprep.subr.mxu0 0.0
    %1796 = vmatpush1.msra.mxu0 0.0
    %1797 = vmatprep.subr.mxu0 0.0
    %1798 = vmatpush1.msra.mxu0 0.0
    %1799 = vmatprep.subr.mxu0 0.0
    %1800 = vmatpush1.msra.mxu0 0.0
    %1801 = vmatprep.subr.mxu0 0.0
    %1802 = vmatpush1.msra.mxu0 0.0
    %1803 = vmatprep.subr.mxu0 0.0
    %1804 = vmatpush1.msra.mxu0 0.0
    %1805 = vmatprep.subr.mxu0 0.0
    %1806 = vmatpush1.msra.mxu0 0.0
    %1807 = vmatprep.subr.mxu0 0.0
    %1808 = vmatpush1.msra.mxu0 0.0
    %1809 = vmatprep.subr.mxu0 0.0
    %1810 = vmatpush1.msra.mxu0 0.0
    %1811 = vmatprep.subr.mxu0 0.0
    %1812 = vmatpush1.msra.mxu0 0.0
    %1813 = vmatprep.subr.mxu0 0.0
    %1814 = vmatpush1.msra.mxu0 0.0
    %1815 = vmatprep.subr.mxu0 0.0
    %1816 = vmatpush1.msra.mxu0 0.0
    %1817 = vmatprep.subr.mxu0 0.0
    %1818 = vmatpush1.msra.mxu0 0.0
    %1819 = vmatprep.subr.mxu0 0.0
    %1820 = vmatpush1.msra.mxu0 0.0
    %1821 = vmatprep.subr.mxu0 0.0
    %1822 = vmatpush1.msra.mxu0 0.0
    %1823 = vmatprep.subr.mxu0 0.0
    %1824 = vmatpush1.msra.mxu0 0.0
    %1825 = vmatprep.subr.mxu0 0.0
    %1826 = vmatpush1.msra.mxu0 0.0
    %1827 = vmatprep.subr.mxu0 0.0
    %1828 = vmatpush1.msra.mxu0 0.0
    %1829 = vmatprep.subr.mxu0 0.0
    %1830 = vmatpush1.msra.mxu0 0.0
    %1831 = vmatprep.subr.mxu0 0.0
    %1832 = vmatpush1.msra.mxu0 0.0
    %1833 = vmatprep.subr.mxu0 0.0
    %1834 = vmatpush1.msra.mxu0 0.0
    %1835 = vmatprep.subr.mxu0 0.0
    %1836 = vmatpush1.msra.mxu0 0.0
    %1837 = vmatprep.subr.mxu0 0.0
    %1838 = vmatpush1.msra.mxu0 0.0
    %1839 = vmatprep.subr.mxu0 0.0
    %1840 = vmatpush1.msra.mxu0 0.0
    %1841 = vmatprep.subr.mxu0 0.0
    %1842 = vmatpush1.msra.mxu0 0.0
    %1843 = vmatprep.subr.mxu0 0.0
    %1844 = vmatpush1.msra.mxu0 0.0
    %1845 = vmatprep.mubr.f32.mxu0 0.0
    %1846 = vmatmul.mubr.f32.gmra.mrb[0].mxu0 %v1779
    %v1847 = vpop.f32.mrb[0].mxu0
    %v1848 = vadd.f32 0.0, %v1847
    %v1849 = vpop.f32.mrb[0].mxu0
    %1850 = vdwg.mxu0
    %v1851 = vadd.f32 %v1775, %v1848
    %v1852 = vxor.u32 %v1851, 2147483648
    %v1853 = vmul.f32 %v1852, 1.442695
    %v1854 = vpow.pop %v1853
    %v1855 = vadd.f32 %v1854, 1.0
    %v1856 = vrcp.pop %v1855
    %v1857 = vmul.f32 1.0, %v1856
    %v1858 = vtanh.pop %v1851
    %v1859 = vmul.f32 %v1857, %v1764
    %1861 = vrot.lane.b32.xlu0 %v1858, 64
    %v1862 = vpop.permute.xlu0 %1861
    %v1864 = vmul.f32 %v1857, %v1862
    %1866 = vrot.lane.b32.xlu0 %v1864, 32
    %v1867 = vpop.permute.xlu0 %1866
    %v1869 = vadd.f32 %v1859, %v1867
    %v1870 = vtanh.pop %v1869
    %1872 = vrot.lane.b32.xlu0 %v1870, 64
    %v1873 = vpop.permute.xlu0 %1872
    %v1875 = vmul.f32 %v1857, %v1873
    %v1876 = vrot.slane %v189, 7
    %v1878 = vrot.slane %v302, 6
    %v1880 = vsel %vm308, %v1876, %v1878
    %1882 = vrot.lane.b32.xlu0 %v1875, 32
    %v1883 = vpop.permute.xlu0 %1882
    %v1884 = vsel %vm310, %v1883, 0
    %1886 = vmatprep.subr.mxu0 0.0
    %1887 = vmatpush1.msra.mxu0 %v67
    %1888 = vmatprep.subr.mxu0 0.0
    %1889 = vmatpush1.msra.mxu0 %v68
    %1890 = vmatprep.subr.mxu0 0.0
    %1891 = vmatpush1.msra.mxu0 %v69
    %1892 = vmatprep.subr.mxu0 0.0
    %1893 = vmatpush1.msra.mxu0 %v70
    %1894 = vmatprep.subr.mxu0 0.0
    %1895 = vmatpush1.msra.mxu0 0.0
    %1896 = vmatprep.subr.mxu0 0.0
    %1897 = vmatpush1.msra.mxu0 0.0
    %1898 = vmatprep.subr.mxu0 0.0
    %1899 = vmatpush1.msra.mxu0 0.0
    %1900 = vmatprep.subr.mxu0 0.0
    %1901 = vmatpush1.msra.mxu0 0.0
    %1902 = vmatprep.subr.mxu0 0.0
    %1903 = vmatpush1.msra.mxu0 0.0
    %1904 = vmatprep.subr.mxu0 0.0
    %1905 = vmatpush1.msra.mxu0 0.0
    %1906 = vmatprep.subr.mxu0 0.0
    %1907 = vmatpush1.msra.mxu0 0.0
    %1908 = vmatprep.subr.mxu0 0.0
    %1909 = vmatpush1.msra.mxu0 0.0
    %1910 = vmatprep.subr.mxu0 0.0
    %1911 = vmatpush1.msra.mxu0 0.0
    %1912 = vmatprep.subr.mxu0 0.0
    %1913 = vmatpush1.msra.mxu0 0.0
    %1914 = vmatprep.subr.mxu0 0.0
    %1915 = vmatpush1.msra.mxu0 0.0
    %1916 = vmatprep.subr.mxu0 0.0
    %1917 = vmatpush1.msra.mxu0 0.0
    %1918 = vmatprep.subr.mxu0 0.0
    %1919 = vmatpush1.msra.mxu0 0.0
    %1920 = vmatprep.subr.mxu0 0.0
    %1921 = vmatpush1.msra.mxu0 0.0
    %1922 = vmatprep.subr.mxu0 0.0
    %1923 = vmatpush1.msra.mxu0 0.0
    %1924 = vmatprep.subr.mxu0 0.0
    %1925 = vmatpush1.msra.mxu0 0.0
    %1926 = vmatprep.subr.mxu0 0.0
    %1927 = vmatpush1.msra.mxu0 0.0
    %1928 = vmatprep.subr.mxu0 0.0
    %1929 = vmatpush1.msra.mxu0 0.0
    %1930 = vmatprep.subr.mxu0 0.0
    %1931 = vmatpush1.msra.mxu0 0.0
    %1932 = vmatprep.subr.mxu0 0.0
    %1933 = vmatpush1.msra.mxu0 0.0
    %1934 = vmatprep.subr.mxu0 0.0
    %1935 = vmatpush1.msra.mxu0 0.0
    %1936 = vmatprep.subr.mxu0 0.0
    %1937 = vmatpush1.msra.mxu0 0.0
    %1938 = vmatprep.subr.mxu0 0.0
    %1939 = vmatpush1.msra.mxu0 0.0
    %1940 = vmatprep.subr.mxu0 0.0
    %1941 = vmatpush1.msra.mxu0 0.0
    %1942 = vmatprep.subr.mxu0 0.0
    %1943 = vmatpush1.msra.mxu0 0.0
    %1944 = vmatprep.subr.mxu0 0.0
    %1945 = vmatpush1.msra.mxu0 0.0
    %1946 = vmatprep.subr.mxu0 0.0
    %1947 = vmatpush1.msra.mxu0 0.0
    %1948 = vmatprep.subr.mxu0 0.0
    %1949 = vmatpush1.msra.mxu0 0.0
    %1950 = vmatprep.mubr.f32.mxu0 0.0
    %1951 = vmatmul.mubr.f32.gmra.mrb[0].mxu0 %v1884
    %v1952 = vpop.f32.mrb[0].mxu0
    %v1953 = vadd.f32 0.0, %v1952
    %v1954 = vpop.f32.mrb[0].mxu0
    %1955 = vdwg.mxu0
    %v1956 = vadd.f32 %v1880, %v1953
    %v1957 = vxor.u32 %v1956, 2147483648
    %v1958 = vmul.f32 %v1957, 1.442695
    %v1959 = vpow.pop %v1958
    %v1960 = vadd.f32 %v1959, 1.0
    %v1961 = vrcp.pop %v1960
    %v1962 = vmul.f32 1.0, %v1961
    %v1963 = vtanh.pop %v1956
    %v1964 = vmul.f32 %v1962, %v1869
    %1966 = vrot.lane.b32.xlu0 %v1963, 64
    %v1967 = vpop.permute.xlu0 %1966
    %v1969 = vmul.f32 %v1962, %v1967
    %1971 = vrot.lane.b32.xlu0 %v1969, 32
    %v1972 = vpop.permute.xlu0 %1971
    %v1974 = vadd.f32 %v1964, %v1972
    %v1975 = vtanh.pop %v1974
    %1977 = vrot.lane.b32.xlu0 %v1975, 64
    %v1978 = vpop.permute.xlu0 %1977
    %v1980 = vmul.f32 %v1962, %v1978
    %1982 = vrot.lane.b32.xlu0 %v1980, 32
    %v1983 = vpop.permute.xlu0 %1982
    %vm1985 = vcmask 254976
    %1986 = vst.msk [vmem:[#allocation4] sm:$0x3] %vm1985, %v1983
    // Predicated region
    $region26: #{encoder_forward.1} parent=1 // pred_check
      _
    $region27: #{encoder_forward.1} parent=1 // pred_check_branch
      %1988 = sbr.rel (0) target = $region29
    $region28: #{encoder_forward.1} parent=1 // pred_region
      %s1990 = ssub.s32 256, 256
      %1991 = vsyncadd [#allocation3], %s1990
      %s1992 = sshll.u32 [#allocation2], 4
      %s1993 = int_to_ptr.vmem [resolvable:$true] %s1992
      %1998 = dma.vmem_to_hbm [thread:$0]  %s1993, 256, %s6, [#allocation3], 128, 128, 8
    $region29: #{encoder_forward.1} parent=1 // pred_fallthru
      _
    // Predicated region
    $region30: #{encoder_forward.1} parent=1 // pred_check
      _
    $region31: #{encoder_forward.1} parent=1 // pred_check_branch
      %2000 = sbr.rel (0) target = $region33
    $region32: #{encoder_forward.1} parent=1 // pred_region
      %s2002 = ssub.s32 32, 32
      %2003 = vsyncadd [#allocation5], %s2002
      %s2005 = sshll.u32 [#allocation4], 4
      %s2006 = int_to_ptr.vmem [resolvable:$true] %s2005
      %2008 = dma.vmem_to_hbm [thread:$0]  %s2006, 32, %s7, [#allocation5]
    $region33: #{encoder_forward.1} parent=1 // pred_fallthru
      _
    // Predicated region
    $region34: #{encoder_forward.1} parent=1 // pred_check
      _
    $region35: #{encoder_forward.1} parent=1 // pred_check_branch
      %2010 = sbr.rel (0) target = $region37
    $region36: #{encoder_forward.1} parent=1 // pred_region
      _
    $region37: #{encoder_forward.1} parent=1 // pred_fallthru
      _
    // Predicated region
    $region38: #{encoder_forward.1} parent=1 // pred_check
      _
    $region39: #{encoder_forward.1} parent=1 // pred_check_branch
      %2012 = sbr.rel (0) target = $region41
    $region40: #{encoder_forward.1} parent=1 // pred_region
      %2013 = dma.done [#allocation3], 256
    $region41: #{encoder_forward.1} parent=1 // pred_fallthru
      _
    // Predicated region
    $region42: #{encoder_forward.1} parent=1 // pred_check
      _
    $region43: #{encoder_forward.1} parent=1 // pred_check_branch
      %2015 = sbr.rel (0) target = $region45
    $region44: #{encoder_forward.1} parent=1 // pred_region
      %2016 = dma.done [#allocation5], 32
    $region45: #{encoder_forward.1} parent=1 // pred_fallthru
      _
    // Predicated region
    $region46: #{encoder_forward.1} parent=1 // pred_check
      _
    $region47: #{encoder_forward.1} parent=1 // pred_check_branch
      %2018 = sbr.rel (0) target = $region49
    $region48: #{encoder_forward.1} parent=1 // pred_region
      _
    $region49: #{encoder_forward.1} parent=1 // pred_fallthru
      _
    %2019 = vsyncpa [#allocation3], 1
    %2020 = vsyncpa [#allocation5], 1

</llo_original>
